<compile_context>
chip_gen: v6e
topology: v6e:2x2x1
jax: 0.10.0
libtpu: 0.0.40
codegen_flags: <defaults>
</compile_context>

<pallas_src>
import functools
import math

import jax
import jax.numpy as jnp
from jax.experimental import pallas as pl
from jax.experimental.pallas import tpu as pltpu


# ----------------------------- Pallas kernel --------------------------------


def _transformer_block_kernel(
    x_ref,       # (R, D)  f32, R = batch_block * N rows
    ln_g_ref,    # (1, D)  f32
    ln_b_ref,    # (1, D)  f32
    wqkv_ref,    # (D, 3*inner)  bf16  (scale folded into the Q columns)
    wo_ref,      # (inner, D)    bf16
    bo_ref,      # (1, D)  f32
    w1_ref,      # (D, M)  bf16
    b1_ref,      # (1, M)  f32
    w2_ref,      # (M, D)  bf16
    b2_ref,      # (1, D)  f32
    o_ref,       # (R, D)  f32
    *,
    seq,
    heads,
    dim_head,
    mlp_chunk,
    compute_dtype,
):
    x = x_ref[...]                                   # (R, D) f32
    R = x.shape[0]
    D = x.shape[1]
    N, H, dh = seq, heads, dim_head
    inner = H * dh
    bb = R // N                                      # batch elements in this block
    cdt = compute_dtype

    # ---- LayerNorm (nn.LayerNorm, eps=1e-5, affine), f32 ----
    mean = jnp.mean(x, axis=-1, keepdims=True)
    var = jnp.mean(jnp.square(x - mean), axis=-1, keepdims=True)
    xn = (x - mean) * jax.lax.rsqrt(var + 1e-5)
    xn = xn * ln_g_ref[...] + ln_b_ref[...]

    # ---- Fused QKV projection (bias-free): one wide bf16 MXU matmul ----
    # 1/sqrt(dh) is already folded into the Q columns of W_qkv.
    qkv = jnp.dot(xn.astype(cdt), wqkv_ref[...],
                  preferred_element_type=jnp.float32)     # (R, 3*inner) f32

    # ---- Attention.  All slices start at multiples of dh lanes (128 in the
    # demo) and multiples of N sublanes, so they are free views.  Each head's
    # context is folded directly into the output projection by accumulating
    # ctx_h @ Wo[h*dh:(h+1)*dh, :]  -- no concat of narrow head pieces. ----
    attn_acc = jnp.zeros((R, D), jnp.float32)
    for h in range(H):
        lo = h * dh
        wo_h = wo_ref[pl.ds(lo, dh), :]                   # (dh, D) bf16

        ctx_rows = []
        for b in range(bb):                               # static, small
            r0 = b * N
            qh = qkv[r0:r0 + N, lo:lo + dh].astype(cdt)                      # (N, dh)
            kh = qkv[r0:r0 + N, inner + lo:inner + lo + dh].astype(cdt)      # (N, dh)
            vh = qkv[r0:r0 + N, 2 * inner + lo:2 * inner + lo + dh].astype(cdt)

            # scores = q @ k^T (contract over dh on both operands; no explicit
            # transpose materialized).
            s = jax.lax.dot_general(
                qh, kh, (((1,), (1,)), ((), ())),
                preferred_element_type=jnp.float32)        # (N, N) f32
            s = s - jnp.max(s, axis=-1, keepdims=True)
            e = jnp.exp(s)
            p = e * pl.reciprocal(jnp.sum(e, axis=-1, keepdims=True),
                                  approx=True)
            ctx_rows.append(jnp.dot(p.astype(cdt), vh,
                                    preferred_element_type=jnp.float32))  # (N, dh)

        ctx_h = ctx_rows[0] if bb == 1 else jnp.concatenate(ctx_rows, axis=0)  # (R, dh)
        attn_acc = attn_acc + jnp.dot(ctx_h.astype(cdt), wo_h,
                                      preferred_element_type=jnp.float32)

    # ---- PreNormattention residual (to_out bias added once) ----
    x1 = attn_acc + bo_ref[...] + x                   # (R, D) f32
    x1_c = x1.astype(cdt)

    # ---- FeedForward: Linear -> exact GELU -> Linear, tiled over mlp_dim ----
    # (dropouts are identity in eval mode)
    M = w1_ref.shape[1]
    ff = jnp.zeros((R, D), jnp.float32)
    for c in range(0, M, mlp_chunk):
        w1_c = w1_ref[:, pl.ds(c, mlp_chunk)]             # (D, mc)  bf16
        b1_c = b1_ref[:, pl.ds(c, mlp_chunk)]             # (1, mc)  f32
        hid = jnp.dot(x1_c, w1_c, preferred_element_type=jnp.float32) + b1_c
        hid = 0.5 * hid * (1.0 + jax.lax.erf(hid * 0.7071067811865476))  # exact GELU
        ff = ff + jnp.dot(hid.astype(cdt), w2_ref[pl.ds(c, mlp_chunk), :],
                          preferred_element_type=jnp.float32)

    o_ref[...] = ff + b2_ref[...] + x1


# --------------------------------- wrapper ----------------------------------


def transformer_v2_forward(x, params, *, heads, dim_head, batch_block=None,
                           ffn_chunk=None, compute_dtype=jnp.bfloat16):
    """x: (B, N, D) float32. Single-layer (depth=1) Transformer_v2 forward."""
    B, N, D = x.shape
    inner = heads * dim_head
    mlp_dim = params["w1"].shape[1]
    scale = dim_head ** (-0.5)

    if batch_block is None:
        batch_block = B
        # On a 2-TensorCore chip (v7x) split the batch so the "parallel" grid
        # axis shards across both cores; single-TC chips keep grid=(1,).
        try:
            kind = jax.devices()[0].device_kind.lower()
        except Exception:
            kind = ""
        if "v7" in kind and B % 2 == 0:
            batch_block = B // 2

    assert B % batch_block == 0, "batch_block must divide B"
    nb = B // batch_block
    rows = batch_block * N
    # (8, 128) sublane rule for the (rows, D) blocks.
    assert rows % 8 == 0, f"rows per block ({rows}) must be a multiple of 8"
    assert batch_block == 1 or N % 8 == 0, (
        "N must be a multiple of 8 when collapsing several batch elements "
        "into one block")

    if ffn_chunk is None:
        ffn_chunk = mlp_dim if (mlp_dim <= 1024 or mlp_dim % 1024 != 0) else 1024
    assert mlp_dim % ffn_chunk == 0, "ffn_chunk must divide mlp_dim"

    # Fold attention scale into the Q columns of W_qkv (one-time host cost),
    # then convert matmul weights to bf16; biases / LN params stay f32.
    w_qkv = params["w_qkv"].at[:, :inner].multiply(scale)
    weights = (
        params["ln_g"], params["ln_b"],
        w_qkv.astype(compute_dtype),
        params["wo"].astype(compute_dtype), params["bo"],
        params["w1"].astype(compute_dtype), params["b1"],
        params["w2"].astype(compute_dtype), params["b2"],
    )

    x2 = x.reshape(B * N, D)   # collapse batch into the sublane axis (free in XLA)

    kernel = functools.partial(
        _transformer_block_kernel,
        seq=N, heads=heads, dim_head=dim_head,
        mlp_chunk=ffn_chunk, compute_dtype=compute_dtype)

    def w_spec(a):
        nd = a.ndim
        return pl.BlockSpec(a.shape, lambda i, _nd=nd: (0,) * _nd)

    in_specs = [pl.BlockSpec((rows, D), lambda i: (i, 0))]
    in_specs += [w_spec(a) for a in weights]

    # Advisory cost / VMEM numbers.
    weight_bytes = sum(int(w.size) * int(w.dtype.itemsize) for w in weights)
    io_bytes = 2 * 4 * B * N * D
    flops = (2 * B * N * D * 3 * inner          # QKV projection
             + 4 * B * N * N * inner            # scores + context
             + 2 * B * N * inner * D            # output projection
             + 4 * B * N * D * mlp_dim)         # FFN
    transcendentals = B * N * (heads * N + mlp_dim)

    act_bytes = 4 * rows * (4 * D + 3 * inner + ffn_chunk) \
        + 4 * batch_block * heads * N * N
    vmem_est = 2 * (4 * rows * D * 2 + weight_bytes) + act_bytes
    vmem_limit = int(min(max(vmem_est, 32 * 1024 * 1024), 64 * 1024 * 1024))

    out = pl.pallas_call(
        kernel,
        out_shape=jax.ShapeDtypeStruct((B * N, D), jnp.float32),
        grid_spec=pltpu.PrefetchScalarGridSpec(
            num_scalar_prefetch=0,
            grid=(nb,),
            in_specs=in_specs,
            out_specs=pl.BlockSpec((rows, D), lambda i: (i, 0)),
        ),
        compiler_params=pltpu.CompilerParams(
            dimension_semantics=("parallel",),
            vmem_limit_bytes=vmem_limit),
        cost_estimate=pl.CostEstimate(
            flops=int(flops),
            transcendentals=int(transcendentals),
            bytes_accessed=int(io_bytes + weight_bytes)),
    )(x2, *weights)

    return out.reshape(B, N, D)


# ------------------------- parameter initialization -------------------------


def init_params(key, dim, heads, dim_head, mlp_dim):
    inner = heads * dim_head

    def linear_w(k, fan_in, fan_out):
        bound = 1.0 / math.sqrt(fan_in)
        return jax.random.uniform(k, (fan_in, fan_out), jnp.float32, -bound, bound)

    def linear_b(k, fan_in, fan_out):
        bound = 1.0 / math.sqrt(fan_in)
        return jax.random.uniform(k, (fan_out,), jnp.float32, -bound, bound)

    ks = jax.random.split(key, 8)
    return {
        "ln_g": jnp.ones((1, dim), jnp.float32),
        "ln_b": jnp.zeros((1, dim), jnp.float32),
        # to_qkv: Linear(dim, 3*inner, bias=False); columns ordered [q | k | v],
        # within each the head layout is (h, d) -> column h*dim_head + d.
        "w_qkv": linear_w(ks[0], dim, 3 * inner),
        "wo": linear_w(ks[1], inner, dim),
        "bo": linear_b(ks[2], inner, dim).reshape(1, dim),
        "w1": linear_w(ks[3], dim, mlp_dim),
        "b1": linear_b(ks[4], dim, mlp_dim).reshape(1, mlp_dim),
        "w2": linear_w(ks[5], mlp_dim, dim),
        "b2": linear_b(ks[6], mlp_dim, dim).reshape(1, dim),
    }


# ----------------------------- pure-JAX reference ----------------------------


def reference_forward(x, params, *, heads, dim_head):
    B, N, D = x.shape
    inner = heads * dim_head
    scale = dim_head ** (-0.5)

    mean = jnp.mean(x, axis=-1, keepdims=True)
    var = jnp.mean((x - mean) ** 2, axis=-1, keepdims=True)
    xn = (x - mean) / jnp.sqrt(var + 1e-5)
    xn = xn * params["ln_g"][0] + params["ln_b"][0]

    qkv = xn @ params["w_qkv"]                          # (B, N, 3*inner)
    q, k, v = jnp.split(qkv, 3, axis=-1)

    def to_heads(t):
        return t.reshape(B, N, heads, dim_head).transpose(0, 2, 1, 3)

    q, k, v = map(to_heads, (q, k, v))
    dots = jnp.einsum("bhid,bhjd->bhij", q, k) * scale
    attn = jax.nn.softmax(dots, axis=-1)
    ctx = jnp.einsum("bhij,bhjd->bhid", attn, v)
    ctx = ctx.transpose(0, 2, 1, 3).reshape(B, N, inner)
    attn_out = ctx @ params["wo"] + params["bo"][0]
    x1 = attn_out + x

    h = x1 @ params["w1"] + params["b1"][0]
    h = jax.nn.gelu(h, approximate=False)
    ff = h @ params["w2"] + params["b2"][0]
    return ff + x1


# ----------------------------------- main ------------------------------------


if __name__ == "__main__":
    # Small but lane-aligned shapes consistent with the module's forward
    # (x is (b, n, dim); module defaults use dim_head > dim // heads, so
    #  dim_head=128 with dim=128 is consistent): D, inner, mlp_dim are all
    # multiples of 128 so every slice / store in the kernel is lane-dense.
    B, N, D = 2, 8, 128
    HEADS, DIM_HEAD, MLP_DIM = 4, 128, 256   # inner_dim = 512, project_out=True

    key = jax.random.PRNGKey(0)
    kx, kp = jax.random.split(key)
    x = jax.random.normal(kx, (B, N, D), jnp.float32)
    params = init_params(kp, D, HEADS, DIM_HEAD, MLP_DIM)

    out = transformer_v2_forward(x, params, heads=HEADS, dim_head=DIM_HEAD)
    out = jax.block_until_ready(out)

    ref = reference_forward(x, params, heads=HEADS, dim_head=DIM_HEAD)
    assert out.shape == (B, N, D)
    assert bool(jnp.all(jnp.isfinite(out)))
    # Tolerance accounts for bf16 MXU operands (f32 accumulation) and the
    # hardware-approximate softmax reciprocal; a real layout/semantics bug
    # would be orders of magnitude larger.
    max_err = float(jnp.max(jnp.abs(out - ref)))
    assert jnp.allclose(out, ref, atol=3e-2, rtol=3e-2), max_err

    print("KERNEL_OK")
</pallas_src>

<mosaic_0001>
module attributes {stable_mosaic.version = 11 : i64} {
  func.func @_transformer_block_kernel(%arg0: i32, %arg1: memref<16x128xf32, #tpu.memory_space<vmem>>, %arg2: memref<1x128xf32, #tpu.memory_space<vmem>>, %arg3: memref<1x128xf32, #tpu.memory_space<vmem>>, %arg4: memref<128x1536xbf16, #tpu.memory_space<vmem>>, %arg5: memref<512x128xbf16, #tpu.memory_space<vmem>>, %arg6: memref<1x128xf32, #tpu.memory_space<vmem>>, %arg7: memref<128x256xbf16, #tpu.memory_space<vmem>>, %arg8: memref<1x256xf32, #tpu.memory_space<vmem>>, %arg9: memref<256x128xbf16, #tpu.memory_space<vmem>>, %arg10: memref<1x128xf32, #tpu.memory_space<vmem>>, %arg11: memref<16x128xf32, #tpu.memory_space<vmem>>) attributes {dimension_semantics = [#tpu.dimension_semantics<parallel>], iteration_bounds = array<i64: 1>, scalar_prefetch = 0 : i64, scratch_operands = 0 : i64, tpu.core_type = #tpu.core_type<tc>, window_params = [{transform_indices = @transform_0, window_bounds = array<i64: 16, 128>}, {pipeline_mode = #tpu.pipeline_mode<synchronous>, transform_indices = @transform_1, window_bounds = array<i64: 1, 128>}, {pipeline_mode = #tpu.pipeline_mode<synchronous>, transform_indices = @transform_2, window_bounds = array<i64: 1, 128>}, {pipeline_mode = #tpu.pipeline_mode<synchronous>, transform_indices = @transform_3, window_bounds = array<i64: 128, 1536>}, {pipeline_mode = #tpu.pipeline_mode<synchronous>, transform_indices = @transform_4, window_bounds = array<i64: 512, 128>}, {pipeline_mode = #tpu.pipeline_mode<synchronous>, transform_indices = @transform_5, window_bounds = array<i64: 1, 128>}, {pipeline_mode = #tpu.pipeline_mode<synchronous>, transform_indices = @transform_6, window_bounds = array<i64: 128, 256>}, {pipeline_mode = #tpu.pipeline_mode<synchronous>, transform_indices = @transform_7, window_bounds = array<i64: 1, 256>}, {pipeline_mode = #tpu.pipeline_mode<synchronous>, transform_indices = @transform_8, window_bounds = array<i64: 256, 128>}, {pipeline_mode = #tpu.pipeline_mode<synchronous>, transform_indices = @transform_9, window_bounds = array<i64: 1, 128>}, {transform_indices = @transform_10, window_bounds = array<i64: 16, 128>}]} {
    %c0 = arith.constant 0 : index
    %c0_0 = arith.constant 0 : index
    %0 = vector.load %arg1[%c0, %c0_0] : memref<16x128xf32, #tpu.memory_space<vmem>>, vector<16x128xf32>
    %cst = arith.constant dense<0.000000e+00> : vector<16xf32>
    %1 = vector.multi_reduction <add>, %0, %cst [1] : vector<16x128xf32> to vector<16xf32>
    %2 = vector.shape_cast %1 : vector<16xf32> to vector<16x1xf32>
    %cst_1 = arith.constant 1.280000e+02 : f32
    %3 = vector.broadcast %cst_1 : f32 to vector<16x1xf32>
    %4 = arith.divf %2, %3 : vector<16x1xf32>
    %5 = vector.broadcast %4 : vector<16x1xf32> to vector<16x128xf32>
    %6 = arith.subf %0, %5 : vector<16x128xf32>
    %7 = arith.mulf %6, %6 : vector<16x128xf32>
    %cst_2 = arith.constant dense<0.000000e+00> : vector<16xf32>
    %8 = vector.multi_reduction <add>, %7, %cst_2 [1] : vector<16x128xf32> to vector<16xf32>
    %9 = vector.shape_cast %8 : vector<16xf32> to vector<16x1xf32>
    %cst_3 = arith.constant 1.280000e+02 : f32
    %10 = vector.broadcast %cst_3 : f32 to vector<16x1xf32>
    %11 = arith.divf %9, %10 : vector<16x1xf32>
    %12 = vector.broadcast %4 : vector<16x1xf32> to vector<16x128xf32>
    %13 = arith.subf %0, %12 : vector<16x128xf32>
    %cst_4 = arith.constant 9.99999974E-6 : f32
    %14 = vector.broadcast %cst_4 : f32 to vector<16x1xf32>
    %15 = arith.addf %11, %14 : vector<16x1xf32>
    %16 = math.rsqrt %15 : vector<16x1xf32>
    %17 = vector.broadcast %16 : vector<16x1xf32> to vector<16x128xf32>
    %18 = arith.mulf %13, %17 : vector<16x128xf32>
    %c0_5 = arith.constant 0 : index
    %c0_6 = arith.constant 0 : index
    %19 = vector.load %arg2[%c0_5, %c0_6] : memref<1x128xf32, #tpu.memory_space<vmem>>, vector<1x128xf32>
    %20 = vector.broadcast %19 : vector<1x128xf32> to vector<16x128xf32>
    %21 = arith.mulf %18, %20 : vector<16x128xf32>
    %c0_7 = arith.constant 0 : index
    %c0_8 = arith.constant 0 : index
    %22 = vector.load %arg3[%c0_7, %c0_8] : memref<1x128xf32, #tpu.memory_space<vmem>>, vector<1x128xf32>
    %23 = vector.broadcast %22 : vector<1x128xf32> to vector<16x128xf32>
    %24 = arith.addf %21, %23 : vector<16x128xf32>
    %25 = arith.truncf %24 : vector<16x128xf32> to vector<16x128xbf16>
    %c0_9 = arith.constant 0 : index
    %c0_10 = arith.constant 0 : index
    %26 = vector.load %arg4[%c0_9, %c0_10] : memref<128x1536xbf16, #tpu.memory_space<vmem>>, vector<128x1536xbf16>
    %cst_11 = arith.constant dense<0.000000e+00> : vector<16x1536xf32>
    %27 = tpu.matmul %25, %26, %cst_11 {dimension_numbers = #tpu.dot_dimension_numbers<[1], [0], [0], [1], [0, 0, 1, 1], [], []>} : vector<16x128xbf16>, vector<128x1536xbf16>, vector<16x1536xf32> -> vector<16x1536xf32>
    %cst_12 = arith.constant 0.000000e+00 : f32
    %28 = vector.broadcast %cst_12 : f32 to vector<16x128xf32>
    %c0_13 = arith.constant 0 : index
    %c0_14 = arith.constant 0 : index
    %29 = vector.load %arg5[%c0_13, %c0_14] : memref<512x128xbf16, #tpu.memory_space<vmem>>, vector<128x128xbf16>
    %30 = vector.extract_strided_slice %27 {offsets = [0, 0], sizes = [8, 128], strides = [1, 1]} : vector<16x1536xf32> to vector<8x128xf32>
    %31 = arith.truncf %30 : vector<8x128xf32> to vector<8x128xbf16>
    %32 = vector.extract_strided_slice %27 {offsets = [0, 512], sizes = [8, 128], strides = [1, 1]} : vector<16x1536xf32> to vector<8x128xf32>
    %33 = arith.truncf %32 : vector<8x128xf32> to vector<8x128xbf16>
    %34 = vector.extract_strided_slice %27 {offsets = [0, 1024], sizes = [8, 128], strides = [1, 1]} : vector<16x1536xf32> to vector<8x128xf32>
    %35 = arith.truncf %34 : vector<8x128xf32> to vector<8x128xbf16>
    %cst_15 = arith.constant dense<0.000000e+00> : vector<8x8xf32>
    %36 = tpu.matmul %31, %33, %cst_15 {dimension_numbers = #tpu.dot_dimension_numbers<[1], [1], [0], [0], [0, 0, 1, 0], [], []>} : vector<8x128xbf16>, vector<8x128xbf16>, vector<8x8xf32> -> vector<8x8xf32>
    %cst_16 = arith.constant dense<0xFF800000> : vector<8xf32>
    %37 = vector.multi_reduction <maximumf>, %36, %cst_16 [1] : vector<8x8xf32> to vector<8xf32>
    %38 = vector.shape_cast %37 : vector<8xf32> to vector<8x1xf32>
    %39 = vector.broadcast %38 : vector<8x1xf32> to vector<8x8xf32>
    %40 = arith.subf %36, %39 : vector<8x8xf32>
    %41 = math.exp %40 : vector<8x8xf32>
    %cst_17 = arith.constant dense<0.000000e+00> : vector<8xf32>
    %42 = vector.multi_reduction <add>, %41, %cst_17 [1] : vector<8x8xf32> to vector<8xf32>
    %43 = vector.shape_cast %42 : vector<8xf32> to vector<8x1xf32>
    %44 = tpu.reciprocal %43 {approx = true} : vector<8x1xf32> -> vector<8x1xf32>
    %45 = vector.broadcast %44 : vector<8x1xf32> to vector<8x8xf32>
    %46 = arith.mulf %41, %45 : vector<8x8xf32>
    %47 = arith.truncf %46 : vector<8x8xf32> to vector<8x8xbf16>
    %cst_18 = arith.constant dense<0.000000e+00> : vector<8x128xf32>
    %48 = tpu.matmul %47, %35, %cst_18 {dimension_numbers = #tpu.dot_dimension_numbers<[1], [0], [0], [1], [0, 0, 1, 1], [], []>} : vector<8x8xbf16>, vector<8x128xbf16>, vector<8x128xf32> -> vector<8x128xf32>
    %49 = vector.extract_strided_slice %27 {offsets = [8, 0], sizes = [8, 128], strides = [1, 1]} : vector<16x1536xf32> to vector<8x128xf32>
    %50 = arith.truncf %49 : vector<8x128xf32> to vector<8x128xbf16>
    %51 = vector.extract_strided_slice %27 {offsets = [8, 512], sizes = [8, 128], strides = [1, 1]} : vector<16x1536xf32> to vector<8x128xf32>
    %52 = arith.truncf %51 : vector<8x128xf32> to vector<8x128xbf16>
    %53 = vector.extract_strided_slice %27 {offsets = [8, 1024], sizes = [8, 128], strides = [1, 1]} : vector<16x1536xf32> to vector<8x128xf32>
    %54 = arith.truncf %53 : vector<8x128xf32> to vector<8x128xbf16>
    %cst_19 = arith.constant dense<0.000000e+00> : vector<8x8xf32>
    %55 = tpu.matmul %50, %52, %cst_19 {dimension_numbers = #tpu.dot_dimension_numbers<[1], [1], [0], [0], [0, 0, 1, 0], [], []>} : vector<8x128xbf16>, vector<8x128xbf16>, vector<8x8xf32> -> vector<8x8xf32>
    %cst_20 = arith.constant dense<0xFF800000> : vector<8xf32>
    %56 = vector.multi_reduction <maximumf>, %55, %cst_20 [1] : vector<8x8xf32> to vector<8xf32>
    %57 = vector.shape_cast %56 : vector<8xf32> to vector<8x1xf32>
    %58 = vector.broadcast %57 : vector<8x1xf32> to vector<8x8xf32>
    %59 = arith.subf %55, %58 : vector<8x8xf32>
    %60 = math.exp %59 : vector<8x8xf32>
    %cst_21 = arith.constant dense<0.000000e+00> : vector<8xf32>
    %61 = vector.multi_reduction <add>, %60, %cst_21 [1] : vector<8x8xf32> to vector<8xf32>
    %62 = vector.shape_cast %61 : vector<8xf32> to vector<8x1xf32>
    %63 = tpu.reciprocal %62 {approx = true} : vector<8x1xf32> -> vector<8x1xf32>
    %64 = vector.broadcast %63 : vector<8x1xf32> to vector<8x8xf32>
    %65 = arith.mulf %60, %64 : vector<8x8xf32>
    %66 = arith.truncf %65 : vector<8x8xf32> to vector<8x8xbf16>
    %cst_22 = arith.constant dense<0.000000e+00> : vector<8x128xf32>
    %67 = tpu.matmul %66, %54, %cst_22 {dimension_numbers = #tpu.dot_dimension_numbers<[1], [0], [0], [1], [0, 0, 1, 1], [], []>} : vector<8x8xbf16>, vector<8x128xbf16>, vector<8x128xf32> -> vector<8x128xf32>
    %68 = tpu.concatenate %48, %67 in 0 : vector<8x128xf32>, vector<8x128xf32> -> vector<16x128xf32>
    %69 = arith.truncf %68 : vector<16x128xf32> to vector<16x128xbf16>
    %cst_23 = arith.constant dense<0.000000e+00> : vector<16x128xf32>
    %70 = tpu.matmul %69, %29, %cst_23 {dimension_numbers = #tpu.dot_dimension_numbers<[1], [0], [0], [1], [0, 0, 1, 1], [], []>} : vector<16x128xbf16>, vector<128x128xbf16>, vector<16x128xf32> -> vector<16x128xf32>
    %71 = arith.addf %28, %70 : vector<16x128xf32>
    %c128 = arith.constant 128 : index
    %c0_24 = arith.constant 0 : index
    %72 = vector.load %arg5[%c128, %c0_24] : memref<512x128xbf16, #tpu.memory_space<vmem>>, vector<128x128xbf16>
    %73 = vector.extract_strided_slice %27 {offsets = [0, 128], sizes = [8, 128], strides = [1, 1]} : vector<16x1536xf32> to vector<8x128xf32>
    %74 = arith.truncf %73 : vector<8x128xf32> to vector<8x128xbf16>
    %75 = vector.extract_strided_slice %27 {offsets = [0, 640], sizes = [8, 128], strides = [1, 1]} : vector<16x1536xf32> to vector<8x128xf32>
    %76 = arith.truncf %75 : vector<8x128xf32> to vector<8x128xbf16>
    %77 = vector.extract_strided_slice %27 {offsets = [0, 1152], sizes = [8, 128], strides = [1, 1]} : vector<16x1536xf32> to vector<8x128xf32>
    %78 = arith.truncf %77 : vector<8x128xf32> to vector<8x128xbf16>
    %cst_25 = arith.constant dense<0.000000e+00> : vector<8x8xf32>
    %79 = tpu.matmul %74, %76, %cst_25 {dimension_numbers = #tpu.dot_dimension_numbers<[1], [1], [0], [0], [0, 0, 1, 0], [], []>} : vector<8x128xbf16>, vector<8x128xbf16>, vector<8x8xf32> -> vector<8x8xf32>
    %cst_26 = arith.constant dense<0xFF800000> : vector<8xf32>
    %80 = vector.multi_reduction <maximumf>, %79, %cst_26 [1] : vector<8x8xf32> to vector<8xf32>
    %81 = vector.shape_cast %80 : vector<8xf32> to vector<8x1xf32>
    %82 = vector.broadcast %81 : vector<8x1xf32> to vector<8x8xf32>
    %83 = arith.subf %79, %82 : vector<8x8xf32>
    %84 = math.exp %83 : vector<8x8xf32>
    %cst_27 = arith.constant dense<0.000000e+00> : vector<8xf32>
    %85 = vector.multi_reduction <add>, %84, %cst_27 [1] : vector<8x8xf32> to vector<8xf32>
    %86 = vector.shape_cast %85 : vector<8xf32> to vector<8x1xf32>
    %87 = tpu.reciprocal %86 {approx = true} : vector<8x1xf32> -> vector<8x1xf32>
    %88 = vector.broadcast %87 : vector<8x1xf32> to vector<8x8xf32>
    %89 = arith.mulf %84, %88 : vector<8x8xf32>
    %90 = arith.truncf %89 : vector<8x8xf32> to vector<8x8xbf16>
    %cst_28 = arith.constant dense<0.000000e+00> : vector<8x128xf32>
    %91 = tpu.matmul %90, %78, %cst_28 {dimension_numbers = #tpu.dot_dimension_numbers<[1], [0], [0], [1], [0, 0, 1, 1], [], []>} : vector<8x8xbf16>, vector<8x128xbf16>, vector<8x128xf32> -> vector<8x128xf32>
    %92 = vector.extract_strided_slice %27 {offsets = [8, 128], sizes = [8, 128], strides = [1, 1]} : vector<16x1536xf32> to vector<8x128xf32>
    %93 = arith.truncf %92 : vector<8x128xf32> to vector<8x128xbf16>
    %94 = vector.extract_strided_slice %27 {offsets = [8, 640], sizes = [8, 128], strides = [1, 1]} : vector<16x1536xf32> to vector<8x128xf32>
    %95 = arith.truncf %94 : vector<8x128xf32> to vector<8x128xbf16>
    %96 = vector.extract_strided_slice %27 {offsets = [8, 1152], sizes = [8, 128], strides = [1, 1]} : vector<16x1536xf32> to vector<8x128xf32>
    %97 = arith.truncf %96 : vector<8x128xf32> to vector<8x128xbf16>
    %cst_29 = arith.constant dense<0.000000e+00> : vector<8x8xf32>
    %98 = tpu.matmul %93, %95, %cst_29 {dimension_numbers = #tpu.dot_dimension_numbers<[1], [1], [0], [0], [0, 0, 1, 0], [], []>} : vector<8x128xbf16>, vector<8x128xbf16>, vector<8x8xf32> -> vector<8x8xf32>
    %cst_30 = arith.constant dense<0xFF800000> : vector<8xf32>
    %99 = vector.multi_reduction <maximumf>, %98, %cst_30 [1] : vector<8x8xf32> to vector<8xf32>
    %100 = vector.shape_cast %99 : vector<8xf32> to vector<8x1xf32>
    %101 = vector.broadcast %100 : vector<8x1xf32> to vector<8x8xf32>
    %102 = arith.subf %98, %101 : vector<8x8xf32>
    %103 = math.exp %102 : vector<8x8xf32>
    %cst_31 = arith.constant dense<0.000000e+00> : vector<8xf32>
    %104 = vector.multi_reduction <add>, %103, %cst_31 [1] : vector<8x8xf32> to vector<8xf32>
    %105 = vector.shape_cast %104 : vector<8xf32> to vector<8x1xf32>
    %106 = tpu.reciprocal %105 {approx = true} : vector<8x1xf32> -> vector<8x1xf32>
    %107 = vector.broadcast %106 : vector<8x1xf32> to vector<8x8xf32>
    %108 = arith.mulf %103, %107 : vector<8x8xf32>
    %109 = arith.truncf %108 : vector<8x8xf32> to vector<8x8xbf16>
    %cst_32 = arith.constant dense<0.000000e+00> : vector<8x128xf32>
    %110 = tpu.matmul %109, %97, %cst_32 {dimension_numbers = #tpu.dot_dimension_numbers<[1], [0], [0], [1], [0, 0, 1, 1], [], []>} : vector<8x8xbf16>, vector<8x128xbf16>, vector<8x128xf32> -> vector<8x128xf32>
    %111 = tpu.concatenate %91, %110 in 0 : vector<8x128xf32>, vector<8x128xf32> -> vector<16x128xf32>
    %112 = arith.truncf %111 : vector<16x128xf32> to vector<16x128xbf16>
    %cst_33 = arith.constant dense<0.000000e+00> : vector<16x128xf32>
    %113 = tpu.matmul %112, %72, %cst_33 {dimension_numbers = #tpu.dot_dimension_numbers<[1], [0], [0], [1], [0, 0, 1, 1], [], []>} : vector<16x128xbf16>, vector<128x128xbf16>, vector<16x128xf32> -> vector<16x128xf32>
    %114 = arith.addf %71, %113 : vector<16x128xf32>
    %c256 = arith.constant 256 : index
    %c0_34 = arith.constant 0 : index
    %115 = vector.load %arg5[%c256, %c0_34] : memref<512x128xbf16, #tpu.memory_space<vmem>>, vector<128x128xbf16>
    %116 = vector.extract_strided_slice %27 {offsets = [0, 256], sizes = [8, 128], strides = [1, 1]} : vector<16x1536xf32> to vector<8x128xf32>
    %117 = arith.truncf %116 : vector<8x128xf32> to vector<8x128xbf16>
    %118 = vector.extract_strided_slice %27 {offsets = [0, 768], sizes = [8, 128], strides = [1, 1]} : vector<16x1536xf32> to vector<8x128xf32>
    %119 = arith.truncf %118 : vector<8x128xf32> to vector<8x128xbf16>
    %120 = vector.extract_strided_slice %27 {offsets = [0, 1280], sizes = [8, 128], strides = [1, 1]} : vector<16x1536xf32> to vector<8x128xf32>
    %121 = arith.truncf %120 : vector<8x128xf32> to vector<8x128xbf16>
    %cst_35 = arith.constant dense<0.000000e+00> : vector<8x8xf32>
    %122 = tpu.matmul %117, %119, %cst_35 {dimension_numbers = #tpu.dot_dimension_numbers<[1], [1], [0], [0], [0, 0, 1, 0], [], []>} : vector<8x128xbf16>, vector<8x128xbf16>, vector<8x8xf32> -> vector<8x8xf32>
    %cst_36 = arith.constant dense<0xFF800000> : vector<8xf32>
    %123 = vector.multi_reduction <maximumf>, %122, %cst_36 [1] : vector<8x8xf32> to vector<8xf32>
    %124 = vector.shape_cast %123 : vector<8xf32> to vector<8x1xf32>
    %125 = vector.broadcast %124 : vector<8x1xf32> to vector<8x8xf32>
    %126 = arith.subf %122, %125 : vector<8x8xf32>
    %127 = math.exp %126 : vector<8x8xf32>
    %cst_37 = arith.constant dense<0.000000e+00> : vector<8xf32>
    %128 = vector.multi_reduction <add>, %127, %cst_37 [1] : vector<8x8xf32> to vector<8xf32>
    %129 = vector.shape_cast %128 : vector<8xf32> to vector<8x1xf32>
    %130 = tpu.reciprocal %129 {approx = true} : vector<8x1xf32> -> vector<8x1xf32>
    %131 = vector.broadcast %130 : vector<8x1xf32> to vector<8x8xf32>
    %132 = arith.mulf %127, %131 : vector<8x8xf32>
    %133 = arith.truncf %132 : vector<8x8xf32> to vector<8x8xbf16>
    %cst_38 = arith.constant dense<0.000000e+00> : vector<8x128xf32>
    %134 = tpu.matmul %133, %121, %cst_38 {dimension_numbers = #tpu.dot_dimension_numbers<[1], [0], [0], [1], [0, 0, 1, 1], [], []>} : vector<8x8xbf16>, vector<8x128xbf16>, vector<8x128xf32> -> vector<8x128xf32>
    %135 = vector.extract_strided_slice %27 {offsets = [8, 256], sizes = [8, 128], strides = [1, 1]} : vector<16x1536xf32> to vector<8x128xf32>
    %136 = arith.truncf %135 : vector<8x128xf32> to vector<8x128xbf16>
    %137 = vector.extract_strided_slice %27 {offsets = [8, 768], sizes = [8, 128], strides = [1, 1]} : vector<16x1536xf32> to vector<8x128xf32>
    %138 = arith.truncf %137 : vector<8x128xf32> to vector<8x128xbf16>
    %139 = vector.extract_strided_slice %27 {offsets = [8, 1280], sizes = [8, 128], strides = [1, 1]} : vector<16x1536xf32> to vector<8x128xf32>
    %140 = arith.truncf %139 : vector<8x128xf32> to vector<8x128xbf16>
    %cst_39 = arith.constant dense<0.000000e+00> : vector<8x8xf32>
    %141 = tpu.matmul %136, %138, %cst_39 {dimension_numbers = #tpu.dot_dimension_numbers<[1], [1], [0], [0], [0, 0, 1, 0], [], []>} : vector<8x128xbf16>, vector<8x128xbf16>, vector<8x8xf32> -> vector<8x8xf32>
    %cst_40 = arith.constant dense<0xFF800000> : vector<8xf32>
    %142 = vector.multi_reduction <maximumf>, %141, %cst_40 [1] : vector<8x8xf32> to vector<8xf32>
    %143 = vector.shape_cast %142 : vector<8xf32> to vector<8x1xf32>
    %144 = vector.broadcast %143 : vector<8x1xf32> to vector<8x8xf32>
    %145 = arith.subf %141, %144 : vector<8x8xf32>
    %146 = math.exp %145 : vector<8x8xf32>
    %cst_41 = arith.constant dense<0.000000e+00> : vector<8xf32>
    %147 = vector.multi_reduction <add>, %146, %cst_41 [1] : vector<8x8xf32> to vector<8xf32>
    %148 = vector.shape_cast %147 : vector<8xf32> to vector<8x1xf32>
    %149 = tpu.reciprocal %148 {approx = true} : vector<8x1xf32> -> vector<8x1xf32>
    %150 = vector.broadcast %149 : vector<8x1xf32> to vector<8x8xf32>
    %151 = arith.mulf %146, %150 : vector<8x8xf32>
    %152 = arith.truncf %151 : vector<8x8xf32> to vector<8x8xbf16>
    %cst_42 = arith.constant dense<0.000000e+00> : vector<8x128xf32>
    %153 = tpu.matmul %152, %140, %cst_42 {dimension_numbers = #tpu.dot_dimension_numbers<[1], [0], [0], [1], [0, 0, 1, 1], [], []>} : vector<8x8xbf16>, vector<8x128xbf16>, vector<8x128xf32> -> vector<8x128xf32>
    %154 = tpu.concatenate %134, %153 in 0 : vector<8x128xf32>, vector<8x128xf32> -> vector<16x128xf32>
    %155 = arith.truncf %154 : vector<16x128xf32> to vector<16x128xbf16>
    %cst_43 = arith.constant dense<0.000000e+00> : vector<16x128xf32>
    %156 = tpu.matmul %155, %115, %cst_43 {dimension_numbers = #tpu.dot_dimension_numbers<[1], [0], [0], [1], [0, 0, 1, 1], [], []>} : vector<16x128xbf16>, vector<128x128xbf16>, vector<16x128xf32> -> vector<16x128xf32>
    %157 = arith.addf %114, %156 : vector<16x128xf32>
    %c384 = arith.constant 384 : index
    %c0_44 = arith.constant 0 : index
    %158 = vector.load %arg5[%c384, %c0_44] : memref<512x128xbf16, #tpu.memory_space<vmem>>, vector<128x128xbf16>
    %159 = vector.extract_strided_slice %27 {offsets = [0, 384], sizes = [8, 128], strides = [1, 1]} : vector<16x1536xf32> to vector<8x128xf32>
    %160 = arith.truncf %159 : vector<8x128xf32> to vector<8x128xbf16>
    %161 = vector.extract_strided_slice %27 {offsets = [0, 896], sizes = [8, 128], strides = [1, 1]} : vector<16x1536xf32> to vector<8x128xf32>
    %162 = arith.truncf %161 : vector<8x128xf32> to vector<8x128xbf16>
    %163 = vector.extract_strided_slice %27 {offsets = [0, 1408], sizes = [8, 128], strides = [1, 1]} : vector<16x1536xf32> to vector<8x128xf32>
    %164 = arith.truncf %163 : vector<8x128xf32> to vector<8x128xbf16>
    %cst_45 = arith.constant dense<0.000000e+00> : vector<8x8xf32>
    %165 = tpu.matmul %160, %162, %cst_45 {dimension_numbers = #tpu.dot_dimension_numbers<[1], [1], [0], [0], [0, 0, 1, 0], [], []>} : vector<8x128xbf16>, vector<8x128xbf16>, vector<8x8xf32> -> vector<8x8xf32>
    %cst_46 = arith.constant dense<0xFF800000> : vector<8xf32>
    %166 = vector.multi_reduction <maximumf>, %165, %cst_46 [1] : vector<8x8xf32> to vector<8xf32>
    %167 = vector.shape_cast %166 : vector<8xf32> to vector<8x1xf32>
    %168 = vector.broadcast %167 : vector<8x1xf32> to vector<8x8xf32>
    %169 = arith.subf %165, %168 : vector<8x8xf32>
    %170 = math.exp %169 : vector<8x8xf32>
    %cst_47 = arith.constant dense<0.000000e+00> : vector<8xf32>
    %171 = vector.multi_reduction <add>, %170, %cst_47 [1] : vector<8x8xf32> to vector<8xf32>
    %172 = vector.shape_cast %171 : vector<8xf32> to vector<8x1xf32>
    %173 = tpu.reciprocal %172 {approx = true} : vector<8x1xf32> -> vector<8x1xf32>
    %174 = vector.broadcast %173 : vector<8x1xf32> to vector<8x8xf32>
    %175 = arith.mulf %170, %174 : vector<8x8xf32>
    %176 = arith.truncf %175 : vector<8x8xf32> to vector<8x8xbf16>
    %cst_48 = arith.constant dense<0.000000e+00> : vector<8x128xf32>
    %177 = tpu.matmul %176, %164, %cst_48 {dimension_numbers = #tpu.dot_dimension_numbers<[1], [0], [0], [1], [0, 0, 1, 1], [], []>} : vector<8x8xbf16>, vector<8x128xbf16>, vector<8x128xf32> -> vector<8x128xf32>
    %178 = vector.extract_strided_slice %27 {offsets = [8, 384], sizes = [8, 128], strides = [1, 1]} : vector<16x1536xf32> to vector<8x128xf32>
    %179 = arith.truncf %178 : vector<8x128xf32> to vector<8x128xbf16>
    %180 = vector.extract_strided_slice %27 {offsets = [8, 896], sizes = [8, 128], strides = [1, 1]} : vector<16x1536xf32> to vector<8x128xf32>
    %181 = arith.truncf %180 : vector<8x128xf32> to vector<8x128xbf16>
    %182 = vector.extract_strided_slice %27 {offsets = [8, 1408], sizes = [8, 128], strides = [1, 1]} : vector<16x1536xf32> to vector<8x128xf32>
    %183 = arith.truncf %182 : vector<8x128xf32> to vector<8x128xbf16>
    %cst_49 = arith.constant dense<0.000000e+00> : vector<8x8xf32>
    %184 = tpu.matmul %179, %181, %cst_49 {dimension_numbers = #tpu.dot_dimension_numbers<[1], [1], [0], [0], [0, 0, 1, 0], [], []>} : vector<8x128xbf16>, vector<8x128xbf16>, vector<8x8xf32> -> vector<8x8xf32>
    %cst_50 = arith.constant dense<0xFF800000> : vector<8xf32>
    %185 = vector.multi_reduction <maximumf>, %184, %cst_50 [1] : vector<8x8xf32> to vector<8xf32>
    %186 = vector.shape_cast %185 : vector<8xf32> to vector<8x1xf32>
    %187 = vector.broadcast %186 : vector<8x1xf32> to vector<8x8xf32>
    %188 = arith.subf %184, %187 : vector<8x8xf32>
    %189 = math.exp %188 : vector<8x8xf32>
    %cst_51 = arith.constant dense<0.000000e+00> : vector<8xf32>
    %190 = vector.multi_reduction <add>, %189, %cst_51 [1] : vector<8x8xf32> to vector<8xf32>
    %191 = vector.shape_cast %190 : vector<8xf32> to vector<8x1xf32>
    %192 = tpu.reciprocal %191 {approx = true} : vector<8x1xf32> -> vector<8x1xf32>
    %193 = vector.broadcast %192 : vector<8x1xf32> to vector<8x8xf32>
    %194 = arith.mulf %189, %193 : vector<8x8xf32>
    %195 = arith.truncf %194 : vector<8x8xf32> to vector<8x8xbf16>
    %cst_52 = arith.constant dense<0.000000e+00> : vector<8x128xf32>
    %196 = tpu.matmul %195, %183, %cst_52 {dimension_numbers = #tpu.dot_dimension_numbers<[1], [0], [0], [1], [0, 0, 1, 1], [], []>} : vector<8x8xbf16>, vector<8x128xbf16>, vector<8x128xf32> -> vector<8x128xf32>
    %197 = tpu.concatenate %177, %196 in 0 : vector<8x128xf32>, vector<8x128xf32> -> vector<16x128xf32>
    %198 = arith.truncf %197 : vector<16x128xf32> to vector<16x128xbf16>
    %cst_53 = arith.constant dense<0.000000e+00> : vector<16x128xf32>
    %199 = tpu.matmul %198, %158, %cst_53 {dimension_numbers = #tpu.dot_dimension_numbers<[1], [0], [0], [1], [0, 0, 1, 1], [], []>} : vector<16x128xbf16>, vector<128x128xbf16>, vector<16x128xf32> -> vector<16x128xf32>
    %200 = arith.addf %157, %199 : vector<16x128xf32>
    %c0_54 = arith.constant 0 : index
    %c0_55 = arith.constant 0 : index
    %201 = vector.load %arg6[%c0_54, %c0_55] : memref<1x128xf32, #tpu.memory_space<vmem>>, vector<1x128xf32>
    %202 = vector.broadcast %201 : vector<1x128xf32> to vector<16x128xf32>
    %203 = arith.addf %200, %202 : vector<16x128xf32>
    %204 = arith.addf %203, %0 : vector<16x128xf32>
    %205 = arith.truncf %204 : vector<16x128xf32> to vector<16x128xbf16>
    %cst_56 = arith.constant 0.000000e+00 : f32
    %206 = vector.broadcast %cst_56 : f32 to vector<16x128xf32>
    %c0_57 = arith.constant 0 : index
    %c0_58 = arith.constant 0 : index
    %207 = vector.load %arg7[%c0_57, %c0_58] : memref<128x256xbf16, #tpu.memory_space<vmem>>, vector<128x256xbf16>
    %c0_59 = arith.constant 0 : index
    %c0_60 = arith.constant 0 : index
    %208 = vector.load %arg8[%c0_59, %c0_60] : memref<1x256xf32, #tpu.memory_space<vmem>>, vector<1x256xf32>
    %cst_61 = arith.constant dense<0.000000e+00> : vector<16x256xf32>
    %209 = tpu.matmul %205, %207, %cst_61 {dimension_numbers = #tpu.dot_dimension_numbers<[1], [0], [0], [1], [0, 0, 1, 1], [], []>} : vector<16x128xbf16>, vector<128x256xbf16>, vector<16x256xf32> -> vector<16x256xf32>
    %210 = vector.broadcast %208 : vector<1x256xf32> to vector<16x256xf32>
    %211 = arith.addf %209, %210 : vector<16x256xf32>
    %cst_62 = arith.constant 5.000000e-01 : f32
    %212 = vector.broadcast %cst_62 : f32 to vector<16x256xf32>
    %213 = arith.mulf %212, %211 : vector<16x256xf32>
    %cst_63 = arith.constant 0.707106769 : f32
    %214 = vector.broadcast %cst_63 : f32 to vector<16x256xf32>
    %215 = arith.mulf %211, %214 : vector<16x256xf32>
    %216 = math.erf %215 : vector<16x256xf32>
    %cst_64 = arith.constant 1.000000e+00 : f32
    %217 = vector.broadcast %cst_64 : f32 to vector<16x256xf32>
    %218 = arith.addf %217, %216 : vector<16x256xf32>
    %219 = arith.mulf %213, %218 : vector<16x256xf32>
    %220 = arith.truncf %219 : vector<16x256xf32> to vector<16x256xbf16>
    %c0_65 = arith.constant 0 : index
    %c0_66 = arith.constant 0 : index
    %221 = vector.load %arg9[%c0_65, %c0_66] : memref<256x128xbf16, #tpu.memory_space<vmem>>, vector<256x128xbf16>
    %cst_67 = arith.constant dense<0.000000e+00> : vector<16x128xf32>
    %222 = tpu.matmul %220, %221, %cst_67 {dimension_numbers = #tpu.dot_dimension_numbers<[1], [0], [0], [1], [0, 0, 1, 1], [], []>} : vector<16x256xbf16>, vector<256x128xbf16>, vector<16x128xf32> -> vector<16x128xf32>
    %223 = arith.addf %206, %222 : vector<16x128xf32>
    %c0_68 = arith.constant 0 : index
    %c0_69 = arith.constant 0 : index
    %224 = vector.load %arg10[%c0_68, %c0_69] : memref<1x128xf32, #tpu.memory_space<vmem>>, vector<1x128xf32>
    %225 = vector.broadcast %224 : vector<1x128xf32> to vector<16x128xf32>
    %226 = arith.addf %223, %225 : vector<16x128xf32>
    %227 = arith.addf %226, %204 : vector<16x128xf32>
    %c0_70 = arith.constant 0 : index
    %c0_71 = arith.constant 0 : index
    %228 = vector.load %arg11[%c0_70, %c0_71] : memref<16x128xf32, #tpu.memory_space<vmem>>, vector<16x128xf32>
    tpu.vector_store %arg11[%c0_70, %c0_71], %227 {strides = array<i32>} : memref<16x128xf32, #tpu.memory_space<vmem>>, vector<16x128xf32>,
    return
  }
  func.func @transform_0(%arg0: i32) -> (i32, i32) {
    %c0_i32 = arith.constant 0 : i32
    %c0_i32_0 = arith.constant 0 : i32
    return %arg0, %c0_i32 : i32, i32
  }
  func.func @transform_1(%arg0: i32) -> (i32, i32) {
    %c0_i32 = arith.constant 0 : i32
    %c0_i32_0 = arith.constant 0 : i32
    %c0_i32_1 = arith.constant 0 : i32
    return %c0_i32, %c0_i32_0 : i32, i32
  }
  func.func @transform_2(%arg0: i32) -> (i32, i32) {
    %c0_i32 = arith.constant 0 : i32
    %c0_i32_0 = arith.constant 0 : i32
    %c0_i32_1 = arith.constant 0 : i32
    return %c0_i32, %c0_i32_0 : i32, i32
  }
  func.func @transform_3(%arg0: i32) -> (i32, i32) {
    %c0_i32 = arith.constant 0 : i32
    %c0_i32_0 = arith.constant 0 : i32
    %c0_i32_1 = arith.constant 0 : i32
    return %c0_i32, %c0_i32_0 : i32, i32
  }
  func.func @transform_4(%arg0: i32) -> (i32, i32) {
    %c0_i32 = arith.constant 0 : i32
    %c0_i32_0 = arith.constant 0 : i32
    %c0_i32_1 = arith.constant 0 : i32
    return %c0_i32, %c0_i32_0 : i32, i32
  }
  func.func @transform_5(%arg0: i32) -> (i32, i32) {
    %c0_i32 = arith.constant 0 : i32
    %c0_i32_0 = arith.constant 0 : i32
    %c0_i32_1 = arith.constant 0 : i32
    return %c0_i32, %c0_i32_0 : i32, i32
  }
  func.func @transform_6(%arg0: i32) -> (i32, i32) {
    %c0_i32 = arith.constant 0 : i32
    %c0_i32_0 = arith.constant 0 : i32
    %c0_i32_1 = arith.constant 0 : i32
    return %c0_i32, %c0_i32_0 : i32, i32
  }
  func.func @transform_7(%arg0: i32) -> (i32, i32) {
    %c0_i32 = arith.constant 0 : i32
    %c0_i32_0 = arith.constant 0 : i32
    %c0_i32_1 = arith.constant 0 : i32
    return %c0_i32, %c0_i32_0 : i32, i32
  }
  func.func @transform_8(%arg0: i32) -> (i32, i32) {
    %c0_i32 = arith.constant 0 : i32
    %c0_i32_0 = arith.constant 0 : i32
    %c0_i32_1 = arith.constant 0 : i32
    return %c0_i32, %c0_i32_0 : i32, i32
  }
  func.func @transform_9(%arg0: i32) -> (i32, i32) {
    %c0_i32 = arith.constant 0 : i32
    %c0_i32_0 = arith.constant 0 : i32
    %c0_i32_1 = arith.constant 0 : i32
    return %c0_i32, %c0_i32_0 : i32, i32
  }
  func.func @transform_10(%arg0: i32) -> (i32, i32) {
    %c0_i32 = arith.constant 0 : i32
    %c0_i32_0 = arith.constant 0 : i32
    return %arg0, %c0_i32 : i32, i32
  }
}

</mosaic_0001>

<llo_original>
// kernel: tpu_custom_call.1
$region0: #{tpu_custom_call.1}
  #allocation0 [shape = 'u32[]', space=smem, size = 0x4, offset = 0x4, fixed_abs, tag = 'smem constant byte address 0x4 - core index']
  #allocation1 [shape = 'u32[144,128]{1,0:T(1,128)}', space=vmem, size = 0x12000, scoped, tag = 'internal scratch']
  %s0 = inlined_call_operand.hbm [shape: f32[16,128], index: 0, kind: input, shape index: {}]
  %s1 = inlined_call_operand.vmem [shape: f32[1,128], index: 1, kind: input, shape index: {}]
  %s2 = inlined_call_operand.hbm [shape: f32[1,128], index: 2, kind: input, shape index: {}]
  %s3 = inlined_call_operand.hbm [shape: bf16[128,1536], index: 3, kind: input, shape index: {}]
  %s4 = inlined_call_operand.hbm [shape: bf16[512,128], index: 4, kind: input, shape index: {}]
  %s5 = inlined_call_operand.vmem [shape: f32[1,128], index: 5, kind: input, shape index: {}]
  %s6 = inlined_call_operand.hbm [shape: bf16[128,256], index: 6, kind: input, shape index: {}]
  %s7 = inlined_call_operand.vmem [shape: f32[1,256], index: 7, kind: input, shape index: {}]
  %s8 = inlined_call_operand.hbm [shape: bf16[256,128], index: 8, kind: input, shape index: {}]
  %s9 = inlined_call_operand.vmem [shape: f32[1,128], index: 9, kind: input, shape index: {}]
  %s10 = inlined_call_operand.hbm [shape: f32[16,128], index: 10, kind: output, shape index: {}]
  %s11 = sld [smem:[#allocation0]]
  $region74: #{tpu_custom_call.1} parent=0
    _
  %s13 = ssub.s32 1, %s11
  %s14 = scalar_select 0, %s13, %s11
  $region1: #{tpu_custom_call.1} parent=0
    #allocation2 [shape = 'u8[8192]{0}', space=vmem, size = 0x2000, scoped, tag = 'input window, operand 0, single buffered']
    #allocation3 [shape = 's32[1]{0}', space=sflag, size = 0x4, scoped, tag = 'scoped memory for tpu_custom_call.1']
    #allocation4 [shape = 's32[1]{0}', space=sflag, size = 0x4, scoped, tag = 'scoped memory for tpu_custom_call.1']
    #allocation5 [shape = 'u8[512]{0}', space=vmem, size = 0x400, scoped, tag = 'input window, operand 2, single buffered']
    #allocation6 [shape = 's32[1]{0}', space=sflag, size = 0x4, scoped, tag = 'scoped memory for tpu_custom_call.1']
    #allocation7 [shape = 'u8[393216]{0}', space=vmem, size = 0x60000, scoped, tag = 'input window, operand 3, single buffered']
    #allocation8 [shape = 'u8[131072]{0}', space=vmem, size = 0x20000, scoped, tag = 'input window, operand 4, single buffered']
    #allocation9 [shape = 's32[1]{0}', space=sflag, size = 0x4, scoped, tag = 'scoped memory for tpu_custom_call.1']
    #allocation10 [shape = 'u8[65536]{0}', space=vmem, size = 0x10000, scoped, tag = 'input window, operand 6, single buffered']
    #allocation11 [shape = 'u8[65536]{0}', space=vmem, size = 0x10000, scoped, tag = 'input window, operand 8, single buffered']
    #allocation12 [shape = 's32[1]{0}', space=sflag, size = 0x4, scoped, tag = 'scoped memory for tpu_custom_call.1']
    #allocation13 [shape = 'u8[8192]{0}', space=vmem, size = 0x2000, scoped, tag = 'output window, operand 0, single buffered']
    %15 = vsyncpa [#allocation3], 0
    %16 = vsyncpa [#allocation6], 0
    %17 = vsyncpa [#allocation9], 0
    %18 = vsyncpa [#allocation12], 0
    %19 = vsyncpa [#allocation4], 0
    // Predicated region
    $region2: #{tpu_custom_call.1} parent=1 // pred_check
      _
    $region3: #{tpu_custom_call.1} parent=1 // pred_check_branch
      %21 = sbr.rel (0) target = $region5
    $region4: #{tpu_custom_call.1} parent=1 // pred_region
      %s23 = ssub.s32 256, 256
      %24 = vsyncadd [#allocation3], %s23
      %s25 = sshll.u32 [#allocation2], 4
      %s26 = int_to_ptr.vmem [resolvable:$true] %s25
      %31 = dma.hbm_to_vmem [thread:$0]  %s0, 256, %s26, [#allocation3], 128, 128, 8
    $region5: #{tpu_custom_call.1} parent=1 // pred_fallthru
      _
    // Predicated region
    $region6: #{tpu_custom_call.1} parent=1 // pred_check
      _
    $region7: #{tpu_custom_call.1} parent=1 // pred_check_branch
      %33 = sbr.rel (0) target = $region9
    $region8: #{tpu_custom_call.1} parent=1 // pred_region
      _
    $region9: #{tpu_custom_call.1} parent=1 // pred_fallthru
      _
    // Predicated region
    $region10: #{tpu_custom_call.1} parent=1 // pred_check
      _
    $region11: #{tpu_custom_call.1} parent=1 // pred_check_branch
      %35 = sbr.rel (0) target = $region13
    $region12: #{tpu_custom_call.1} parent=1 // pred_region
      %s37 = ssub.s32 16, 16
      %38 = vsyncadd [#allocation6], %s37
      %s40 = sshll.u32 [#allocation5], 4
      %s41 = int_to_ptr.vmem [resolvable:$true] %s40
      %43 = dma.hbm_to_vmem [thread:$0]  %s2, 16, %s41, [#allocation6]
    $region13: #{tpu_custom_call.1} parent=1 // pred_fallthru
      _
    // Predicated region
    $region14: #{tpu_custom_call.1} parent=1 // pred_check
      _
    $region15: #{tpu_custom_call.1} parent=1 // pred_check_branch
      %45 = sbr.rel (0) target = $region17
    $region16: #{tpu_custom_call.1} parent=1 // pred_region
      %s47 = ssub.s32 12288, 12288
      %48 = vsyncadd [#allocation6], %s47
      %s49 = sshll.u32 [#allocation7], 4
      %s50 = int_to_ptr.vmem [resolvable:$true] %s49
      %55 = dma.hbm_to_vmem [thread:$0]  %s3, 12288, %s50, [#allocation6], 768, 768, 48
    $region17: #{tpu_custom_call.1} parent=1 // pred_fallthru
      _
    // Predicated region
    $region18: #{tpu_custom_call.1} parent=1 // pred_check
      _
    $region19: #{tpu_custom_call.1} parent=1 // pred_check_branch
      %57 = sbr.rel (0) target = $region21
    $region20: #{tpu_custom_call.1} parent=1 // pred_region
      %s59 = ssub.s32 4096, 4096
      %60 = vsyncadd [#allocation9], %s59
      %s61 = sshll.u32 [#allocation8], 4
      %s62 = int_to_ptr.vmem [resolvable:$true] %s61
      %67 = dma.hbm_to_vmem [thread:$0]  %s4, 4096, %s62, [#allocation9], 64, 64, 4
    $region21: #{tpu_custom_call.1} parent=1 // pred_fallthru
      _
    // Predicated region
    $region22: #{tpu_custom_call.1} parent=1 // pred_check
      _
    $region23: #{tpu_custom_call.1} parent=1 // pred_check_branch
      %69 = sbr.rel (0) target = $region25
    $region24: #{tpu_custom_call.1} parent=1 // pred_region
      _
    $region25: #{tpu_custom_call.1} parent=1 // pred_fallthru
      _
    // Predicated region
    $region26: #{tpu_custom_call.1} parent=1 // pred_check
      _
    $region27: #{tpu_custom_call.1} parent=1 // pred_check_branch
      %71 = sbr.rel (0) target = $region29
    $region28: #{tpu_custom_call.1} parent=1 // pred_region
      %s73 = ssub.s32 2048, 2048
      %74 = vsyncadd [#allocation9], %s73
      %s75 = sshll.u32 [#allocation10], 4
      %s76 = int_to_ptr.vmem [resolvable:$true] %s75
      %81 = dma.hbm_to_vmem [thread:$0]  %s6, 2048, %s76, [#allocation9], 128, 128, 8
    $region29: #{tpu_custom_call.1} parent=1 // pred_fallthru
      _
    // Predicated region
    $region30: #{tpu_custom_call.1} parent=1 // pred_check
      _
    $region31: #{tpu_custom_call.1} parent=1 // pred_check_branch
      %83 = sbr.rel (0) target = $region33
    $region32: #{tpu_custom_call.1} parent=1 // pred_region
      _
    $region33: #{tpu_custom_call.1} parent=1 // pred_fallthru
      _
    // Predicated region
    $region34: #{tpu_custom_call.1} parent=1 // pred_check
      _
    $region35: #{tpu_custom_call.1} parent=1 // pred_check_branch
      %85 = sbr.rel (0) target = $region37
    $region36: #{tpu_custom_call.1} parent=1 // pred_region
      %s87 = ssub.s32 2048, 2048
      %88 = vsyncadd [#allocation12], %s87
      %s89 = sshll.u32 [#allocation11], 4
      %s90 = int_to_ptr.vmem [resolvable:$true] %s89
      %95 = dma.hbm_to_vmem [thread:$0]  %s8, 2048, %s90, [#allocation12], 64, 64, 4
    $region37: #{tpu_custom_call.1} parent=1 // pred_fallthru
      _
    // Predicated region
    $region38: #{tpu_custom_call.1} parent=1 // pred_check
      _
    $region39: #{tpu_custom_call.1} parent=1 // pred_check_branch
      %97 = sbr.rel (0) target = $region41
    $region40: #{tpu_custom_call.1} parent=1 // pred_region
      _
    $region41: #{tpu_custom_call.1} parent=1 // pred_fallthru
      _
    // Predicated region
    $region42: #{tpu_custom_call.1} parent=1 // pred_check
      _
    $region43: #{tpu_custom_call.1} parent=1 // pred_check_branch
      %99 = sbr.rel (0) target = $region45
    $region44: #{tpu_custom_call.1} parent=1 // pred_region
      %100 = dma.done [#allocation3], 256
    $region45: #{tpu_custom_call.1} parent=1 // pred_fallthru
      _
    // Predicated region
    $region46: #{tpu_custom_call.1} parent=1 // pred_check
      _
    $region47: #{tpu_custom_call.1} parent=1 // pred_check_branch
      %102 = sbr.rel (0) target = $region49
    $region48: #{tpu_custom_call.1} parent=1 // pred_region
      %103 = dma.done [#allocation6], 16
    $region49: #{tpu_custom_call.1} parent=1 // pred_fallthru
      _
    // Predicated region
    $region50: #{tpu_custom_call.1} parent=1 // pred_check
      _
    $region51: #{tpu_custom_call.1} parent=1 // pred_check_branch
      %105 = sbr.rel (0) target = $region53
    $region52: #{tpu_custom_call.1} parent=1 // pred_region
      %106 = dma.done [#allocation6], 12288
    $region53: #{tpu_custom_call.1} parent=1 // pred_fallthru
      _
    // Predicated region
    $region54: #{tpu_custom_call.1} parent=1 // pred_check
      _
    $region55: #{tpu_custom_call.1} parent=1 // pred_check_branch
      %108 = sbr.rel (0) target = $region57
    $region56: #{tpu_custom_call.1} parent=1 // pred_region
      %109 = dma.done [#allocation9], 4096
    $region57: #{tpu_custom_call.1} parent=1 // pred_fallthru
      _
    // Predicated region
    $region58: #{tpu_custom_call.1} parent=1 // pred_check
      _
    $region59: #{tpu_custom_call.1} parent=1 // pred_check_branch
      %111 = sbr.rel (0) target = $region61
    $region60: #{tpu_custom_call.1} parent=1 // pred_region
      %112 = dma.done [#allocation9], 2048
    $region61: #{tpu_custom_call.1} parent=1 // pred_fallthru
      _
    // Predicated region
    $region62: #{tpu_custom_call.1} parent=1 // pred_check
      _
    $region63: #{tpu_custom_call.1} parent=1 // pred_check_branch
      %114 = sbr.rel (0) target = $region65
    $region64: #{tpu_custom_call.1} parent=1 // pred_region
      %115 = dma.done [#allocation12], 2048
    $region65: #{tpu_custom_call.1} parent=1 // pred_fallthru
      _
    %v117 = vld [vmem:[#allocation2] sm:$0xff]
    %v118 = vld [vmem:[#allocation2 + $0x8] sm:$0xff]
    %119 = vadd.xlane.f32.xlu0 %v117
    %v120 = vpop.xlane.xlu0 %119
    %121 = vadd.xlane.f32.xlu0 %v118
    %v122 = vpop.xlane.xlu0 %121
    %v123 = vrcp.pop 128.0
    %v124 = vmul.f32 %v120, %v123
    %v125 = vmul.f32 %v122, %v123
    %v126 = vsub.f32 %v117, %v124
    %v127 = vsub.f32 %v118, %v125
    %v128 = vmul.f32 %v126, %v126
    %v129 = vmul.f32 %v127, %v127
    %130 = vadd.xlane.f32.xlu0 %v128
    %v131 = vpop.xlane.xlu0 %130
    %132 = vadd.xlane.f32.xlu0 %v129
    %v133 = vpop.xlane.xlu0 %132
    %v134 = vmul.f32 %v131, %v123
    %v135 = vmul.f32 %v133, %v123
    %v136 = vadd.f32 %v134, 1e-05
    %v137 = vadd.f32 %v135, 1e-05
    %v138 = vrsqrt.pop %v136
    %v139 = vrsqrt.pop %v137
    %v140 = vmul.f32 %v126, %v138
    %v141 = vmul.f32 %v127, %v139
    %v142 = vld [vmem:[%s1] sm:$0x1]
    %v144 = vlaneseq
    %v145 = vshrl.u32 %v144, 7
    %v146 = vsub.s32 0, %v145
    %v147 = vrot.slane %v142, %v146
    %v149 = vmul.f32 %v140, %v147
    %v150 = vmul.f32 %v141, %v147
    %v151 = vld [vmem:[#allocation5] sm:$0x1]
    %v153 = vlaneseq
    %v154 = vshrl.u32 %v153, 7
    %v155 = vsub.s32 0, %v154
    %v156 = vrot.slane %v151, %v155
    %v158 = vadd.f32 %v149, %v156
    %v159 = vadd.f32 %v150, %v156
    %v160 = vpack.c.bf16 %v159, %v158
    %v161 = vld [vmem:[#allocation7] sm:$0xff]
    %v162 = vld [vmem:[#allocation7 + $0x8] sm:$0xff]
    %v163 = vld [vmem:[#allocation7 + $0x10] sm:$0xff]
    %v164 = vld [vmem:[#allocation7 + $0x18] sm:$0xff]
    %v165 = vld [vmem:[#allocation7 + $0x20] sm:$0xff]
    %v166 = vld [vmem:[#allocation7 + $0x28] sm:$0xff]
    %v167 = vld [vmem:[#allocation7 + $0x30] sm:$0xff]
    %v168 = vld [vmem:[#allocation7 + $0x38] sm:$0xff]
    %v169 = vld [vmem:[#allocation7 + $0x40] sm:$0xff]
    %v170 = vld [vmem:[#allocation7 + $0x48] sm:$0xff]
    %v171 = vld [vmem:[#allocation7 + $0x50] sm:$0xff]
    %v172 = vld [vmem:[#allocation7 + $0x58] sm:$0xff]
    %v173 = vld [vmem:[#allocation7 + $0x60] sm:$0xff]
    %v174 = vld [vmem:[#allocation7 + $0x68] sm:$0xff]
    %v175 = vld [vmem:[#allocation7 + $0x70] sm:$0xff]
    %v176 = vld [vmem:[#allocation7 + $0x78] sm:$0xff]
    %v177 = vld [vmem:[#allocation7 + $0x80] sm:$0xff]
    %v178 = vld [vmem:[#allocation7 + $0x88] sm:$0xff]
    %v179 = vld [vmem:[#allocation7 + $0x90] sm:$0xff]
    %v180 = vld [vmem:[#allocation7 + $0x98] sm:$0xff]
    %v181 = vld [vmem:[#allocation7 + $0xa0] sm:$0xff]
    %v182 = vld [vmem:[#allocation7 + $0xa8] sm:$0xff]
    %v183 = vld [vmem:[#allocation7 + $0xb0] sm:$0xff]
    %v184 = vld [vmem:[#allocation7 + $0xb8] sm:$0xff]
    %v185 = vld [vmem:[#allocation7 + $0xc0] sm:$0xff]
    %v186 = vld [vmem:[#allocation7 + $0xc8] sm:$0xff]
    %v187 = vld [vmem:[#allocation7 + $0xd0] sm:$0xff]
    %v188 = vld [vmem:[#allocation7 + $0xd8] sm:$0xff]
    %v189 = vld [vmem:[#allocation7 + $0xe0] sm:$0xff]
    %v190 = vld [vmem:[#allocation7 + $0xe8] sm:$0xff]
    %v191 = vld [vmem:[#allocation7 + $0xf0] sm:$0xff]
    %v192 = vld [vmem:[#allocation7 + $0xf8] sm:$0xff]
    %v193 = vld [vmem:[#allocation7 + $0x100] sm:$0xff]
    %v194 = vld [vmem:[#allocation7 + $0x108] sm:$0xff]
    %v195 = vld [vmem:[#allocation7 + $0x110] sm:$0xff]
    %v196 = vld [vmem:[#allocation7 + $0x118] sm:$0xff]
    %v197 = vld [vmem:[#allocation7 + $0x120] sm:$0xff]
    %v198 = vld [vmem:[#allocation7 + $0x128] sm:$0xff]
    %v199 = vld [vmem:[#allocation7 + $0x130] sm:$0xff]
    %v200 = vld [vmem:[#allocation7 + $0x138] sm:$0xff]
    %v201 = vld [vmem:[#allocation7 + $0x140] sm:$0xff]
    %v202 = vld [vmem:[#allocation7 + $0x148] sm:$0xff]
    %v203 = vld [vmem:[#allocation7 + $0x150] sm:$0xff]
    %v204 = vld [vmem:[#allocation7 + $0x158] sm:$0xff]
    %v205 = vld [vmem:[#allocation7 + $0x160] sm:$0xff]
    %v206 = vld [vmem:[#allocation7 + $0x168] sm:$0xff]
    %v207 = vld [vmem:[#allocation7 + $0x170] sm:$0xff]
    %v208 = vld [vmem:[#allocation7 + $0x178] sm:$0xff]
    %v209 = vld [vmem:[#allocation7 + $0x180] sm:$0xff]
    %v210 = vld [vmem:[#allocation7 + $0x188] sm:$0xff]
    %v211 = vld [vmem:[#allocation7 + $0x190] sm:$0xff]
    %v212 = vld [vmem:[#allocation7 + $0x198] sm:$0xff]
    %v213 = vld [vmem:[#allocation7 + $0x1a0] sm:$0xff]
    %v214 = vld [vmem:[#allocation7 + $0x1a8] sm:$0xff]
    %v215 = vld [vmem:[#allocation7 + $0x1b0] sm:$0xff]
    %v216 = vld [vmem:[#allocation7 + $0x1b8] sm:$0xff]
    %v217 = vld [vmem:[#allocation7 + $0x1c0] sm:$0xff]
    %v218 = vld [vmem:[#allocation7 + $0x1c8] sm:$0xff]
    %v219 = vld [vmem:[#allocation7 + $0x1d0] sm:$0xff]
    %v220 = vld [vmem:[#allocation7 + $0x1d8] sm:$0xff]
    %v221 = vld [vmem:[#allocation7 + $0x1e0] sm:$0xff]
    %v222 = vld [vmem:[#allocation7 + $0x1e8] sm:$0xff]
    %v223 = vld [vmem:[#allocation7 + $0x1f0] sm:$0xff]
    %v224 = vld [vmem:[#allocation7 + $0x1f8] sm:$0xff]
    %v225 = vld [vmem:[#allocation7 + $0x200] sm:$0xff]
    %v226 = vld [vmem:[#allocation7 + $0x208] sm:$0xff]
    %v227 = vld [vmem:[#allocation7 + $0x210] sm:$0xff]
    %v228 = vld [vmem:[#allocation7 + $0x218] sm:$0xff]
    %v229 = vld [vmem:[#allocation7 + $0x220] sm:$0xff]
    %v230 = vld [vmem:[#allocation7 + $0x228] sm:$0xff]
    %v231 = vld [vmem:[#allocation7 + $0x230] sm:$0xff]
    %v232 = vld [vmem:[#allocation7 + $0x238] sm:$0xff]
    %v233 = vld [vmem:[#allocation7 + $0x240] sm:$0xff]
    %v234 = vld [vmem:[#allocation7 + $0x248] sm:$0xff]
    %v235 = vld [vmem:[#allocation7 + $0x250] sm:$0xff]
    %v236 = vld [vmem:[#allocation7 + $0x258] sm:$0xff]
    %v237 = vld [vmem:[#allocation7 + $0x260] sm:$0xff]
    %v238 = vld [vmem:[#allocation7 + $0x268] sm:$0xff]
    %v239 = vld [vmem:[#allocation7 + $0x270] sm:$0xff]
    %v240 = vld [vmem:[#allocation7 + $0x278] sm:$0xff]
    %v241 = vld [vmem:[#allocation7 + $0x280] sm:$0xff]
    %v242 = vld [vmem:[#allocation7 + $0x288] sm:$0xff]
    %v243 = vld [vmem:[#allocation7 + $0x290] sm:$0xff]
    %v244 = vld [vmem:[#allocation7 + $0x298] sm:$0xff]
    %v245 = vld [vmem:[#allocation7 + $0x2a0] sm:$0xff]
    %v246 = vld [vmem:[#allocation7 + $0x2a8] sm:$0xff]
    %v247 = vld [vmem:[#allocation7 + $0x2b0] sm:$0xff]
    %v248 = vld [vmem:[#allocation7 + $0x2b8] sm:$0xff]
    %v249 = vld [vmem:[#allocation7 + $0x2c0] sm:$0xff]
    %v250 = vld [vmem:[#allocation7 + $0x2c8] sm:$0xff]
    %v251 = vld [vmem:[#allocation7 + $0x2d0] sm:$0xff]
    %v252 = vld [vmem:[#allocation7 + $0x2d8] sm:$0xff]
    %v253 = vld [vmem:[#allocation7 + $0x2e0] sm:$0xff]
    %v254 = vld [vmem:[#allocation7 + $0x2e8] sm:$0xff]
    %v255 = vld [vmem:[#allocation7 + $0x2f0] sm:$0xff]
    %v256 = vld [vmem:[#allocation7 + $0x2f8] sm:$0xff]
    %v353 = vunpack.c.l.b16 %v161
    %v354 = vunpack.c.h.b16 %v161
    %v355 = vunpack.c.l.b16 %v162
    %v356 = vunpack.c.h.b16 %v162
    %v357 = vunpack.c.l.b16 %v163
    %v358 = vunpack.c.h.b16 %v163
    %v359 = vunpack.c.l.b16 %v164
    %v360 = vunpack.c.h.b16 %v164
    %v361 = vunpack.c.l.b16 %v165
    %v362 = vunpack.c.h.b16 %v165
    %v363 = vunpack.c.l.b16 %v166
    %v364 = vunpack.c.h.b16 %v166
    %v365 = vunpack.c.l.b16 %v167
    %v366 = vunpack.c.h.b16 %v167
    %v367 = vunpack.c.l.b16 %v168
    %v368 = vunpack.c.h.b16 %v168
    %v369 = vunpack.c.l.b16 %v169
    %v370 = vunpack.c.h.b16 %v169
    %v371 = vunpack.c.l.b16 %v170
    %v372 = vunpack.c.h.b16 %v170
    %v373 = vunpack.c.l.b16 %v171
    %v374 = vunpack.c.h.b16 %v171
    %v375 = vunpack.c.l.b16 %v172
    %v376 = vunpack.c.h.b16 %v172
    %v377 = vunpack.c.l.b16 %v173
    %v378 = vunpack.c.h.b16 %v173
    %v379 = vunpack.c.l.b16 %v174
    %v380 = vunpack.c.h.b16 %v174
    %v381 = vunpack.c.l.b16 %v175
    %v382 = vunpack.c.h.b16 %v175
    %v383 = vunpack.c.l.b16 %v176
    %v384 = vunpack.c.h.b16 %v176
    %v385 = vunpack.c.l.b16 %v177
    %v386 = vunpack.c.h.b16 %v177
    %v387 = vunpack.c.l.b16 %v178
    %v388 = vunpack.c.h.b16 %v178
    %v389 = vunpack.c.l.b16 %v179
    %v390 = vunpack.c.h.b16 %v179
    %v391 = vunpack.c.l.b16 %v180
    %v392 = vunpack.c.h.b16 %v180
    %v393 = vunpack.c.l.b16 %v181
    %v394 = vunpack.c.h.b16 %v181
    %v395 = vunpack.c.l.b16 %v182
    %v396 = vunpack.c.h.b16 %v182
    %v397 = vunpack.c.l.b16 %v183
    %v398 = vunpack.c.h.b16 %v183
    %v399 = vunpack.c.l.b16 %v184
    %v400 = vunpack.c.h.b16 %v184
    %v401 = vunpack.c.l.b16 %v185
    %v402 = vunpack.c.h.b16 %v185
    %v403 = vunpack.c.l.b16 %v186
    %v404 = vunpack.c.h.b16 %v186
    %v405 = vunpack.c.l.b16 %v187
    %v406 = vunpack.c.h.b16 %v187
    %v407 = vunpack.c.l.b16 %v188
    %v408 = vunpack.c.h.b16 %v188
    %v409 = vunpack.c.l.b16 %v189
    %v410 = vunpack.c.h.b16 %v189
    %v411 = vunpack.c.l.b16 %v190
    %v412 = vunpack.c.h.b16 %v190
    %v413 = vunpack.c.l.b16 %v191
    %v414 = vunpack.c.h.b16 %v191
    %v415 = vunpack.c.l.b16 %v192
    %v416 = vunpack.c.h.b16 %v192
    %v417 = vunpack.c.l.b16 %v193
    %v418 = vunpack.c.h.b16 %v193
    %v419 = vunpack.c.l.b16 %v194
    %v420 = vunpack.c.h.b16 %v194
    %v421 = vunpack.c.l.b16 %v195
    %v422 = vunpack.c.h.b16 %v195
    %v423 = vunpack.c.l.b16 %v196
    %v424 = vunpack.c.h.b16 %v196
    %v425 = vunpack.c.l.b16 %v197
    %v426 = vunpack.c.h.b16 %v197
    %v427 = vunpack.c.l.b16 %v198
    %v428 = vunpack.c.h.b16 %v198
    %v429 = vunpack.c.l.b16 %v199
    %v430 = vunpack.c.h.b16 %v199
    %v431 = vunpack.c.l.b16 %v200
    %v432 = vunpack.c.h.b16 %v200
    %v433 = vunpack.c.l.b16 %v201
    %v434 = vunpack.c.h.b16 %v201
    %v435 = vunpack.c.l.b16 %v202
    %v436 = vunpack.c.h.b16 %v202
    %v437 = vunpack.c.l.b16 %v203
    %v438 = vunpack.c.h.b16 %v203
    %v439 = vunpack.c.l.b16 %v204
    %v440 = vunpack.c.h.b16 %v204
    %v441 = vunpack.c.l.b16 %v205
    %v442 = vunpack.c.h.b16 %v205
    %v443 = vunpack.c.l.b16 %v206
    %v444 = vunpack.c.h.b16 %v206
    %v445 = vunpack.c.l.b16 %v207
    %v446 = vunpack.c.h.b16 %v207
    %v447 = vunpack.c.l.b16 %v208
    %v448 = vunpack.c.h.b16 %v208
    %v449 = vunpack.c.l.b16 %v209
    %v450 = vunpack.c.h.b16 %v209
    %v451 = vunpack.c.l.b16 %v210
    %v452 = vunpack.c.h.b16 %v210
    %v453 = vunpack.c.l.b16 %v211
    %v454 = vunpack.c.h.b16 %v211
    %v455 = vunpack.c.l.b16 %v212
    %v456 = vunpack.c.h.b16 %v212
    %v457 = vunpack.c.l.b16 %v213
    %v458 = vunpack.c.h.b16 %v213
    %v459 = vunpack.c.l.b16 %v214
    %v460 = vunpack.c.h.b16 %v214
    %v461 = vunpack.c.l.b16 %v215
    %v462 = vunpack.c.h.b16 %v215
    %v463 = vunpack.c.l.b16 %v216
    %v464 = vunpack.c.h.b16 %v216
    %v465 = vunpack.c.l.b16 %v217
    %v466 = vunpack.c.h.b16 %v217
    %v467 = vunpack.c.l.b16 %v218
    %v468 = vunpack.c.h.b16 %v218
    %v469 = vunpack.c.l.b16 %v219
    %v470 = vunpack.c.h.b16 %v219
    %v471 = vunpack.c.l.b16 %v220
    %v472 = vunpack.c.h.b16 %v220
    %v473 = vunpack.c.l.b16 %v221
    %v474 = vunpack.c.h.b16 %v221
    %v475 = vunpack.c.l.b16 %v222
    %v476 = vunpack.c.h.b16 %v222
    %v477 = vunpack.c.l.b16 %v223
    %v478 = vunpack.c.h.b16 %v223
    %v479 = vunpack.c.l.b16 %v224
    %v480 = vunpack.c.h.b16 %v224
    %v481 = vunpack.c.l.b16 %v225
    %v482 = vunpack.c.h.b16 %v225
    %v483 = vunpack.c.l.b16 %v226
    %v484 = vunpack.c.h.b16 %v226
    %v485 = vunpack.c.l.b16 %v227
    %v486 = vunpack.c.h.b16 %v227
    %v487 = vunpack.c.l.b16 %v228
    %v488 = vunpack.c.h.b16 %v228
    %v489 = vunpack.c.l.b16 %v229
    %v490 = vunpack.c.h.b16 %v229
    %v491 = vunpack.c.l.b16 %v230
    %v492 = vunpack.c.h.b16 %v230
    %v493 = vunpack.c.l.b16 %v231
    %v494 = vunpack.c.h.b16 %v231
    %v495 = vunpack.c.l.b16 %v232
    %v496 = vunpack.c.h.b16 %v232
    %v497 = vunpack.c.l.b16 %v233
    %v498 = vunpack.c.h.b16 %v233
    %v499 = vunpack.c.l.b16 %v234
    %v500 = vunpack.c.h.b16 %v234
    %v501 = vunpack.c.l.b16 %v235
    %v502 = vunpack.c.h.b16 %v235
    %v503 = vunpack.c.l.b16 %v236
    %v504 = vunpack.c.h.b16 %v236
    %v505 = vunpack.c.l.b16 %v237
    %v506 = vunpack.c.h.b16 %v237
    %v507 = vunpack.c.l.b16 %v238
    %v508 = vunpack.c.h.b16 %v238
    %v509 = vunpack.c.l.b16 %v239
    %v510 = vunpack.c.h.b16 %v239
    %v511 = vunpack.c.l.b16 %v240
    %v512 = vunpack.c.h.b16 %v240
    %v513 = vunpack.c.l.b16 %v241
    %v514 = vunpack.c.h.b16 %v241
    %v515 = vunpack.c.l.b16 %v242
    %v516 = vunpack.c.h.b16 %v242
    %v517 = vunpack.c.l.b16 %v243
    %v518 = vunpack.c.h.b16 %v243
    %v519 = vunpack.c.l.b16 %v244
    %v520 = vunpack.c.h.b16 %v244
    %v521 = vunpack.c.l.b16 %v245
    %v522 = vunpack.c.h.b16 %v245
    %v523 = vunpack.c.l.b16 %v246
    %v524 = vunpack.c.h.b16 %v246
    %v525 = vunpack.c.l.b16 %v247
    %v526 = vunpack.c.h.b16 %v247
    %v527 = vunpack.c.l.b16 %v248
    %v528 = vunpack.c.h.b16 %v248
    %v529 = vunpack.c.l.b16 %v249
    %v530 = vunpack.c.h.b16 %v249
    %v531 = vunpack.c.l.b16 %v250
    %v532 = vunpack.c.h.b16 %v250
    %v533 = vunpack.c.l.b16 %v251
    %v534 = vunpack.c.h.b16 %v251
    %v535 = vunpack.c.l.b16 %v252
    %v536 = vunpack.c.h.b16 %v252
    %v537 = vunpack.c.l.b16 %v253
    %v538 = vunpack.c.h.b16 %v253
    %v539 = vunpack.c.l.b16 %v254
    %v540 = vunpack.c.h.b16 %v254
    %v541 = vunpack.c.l.b16 %v255
    %v542 = vunpack.c.h.b16 %v255
    %v543 = vunpack.c.l.b16 %v256
    %v544 = vunpack.c.h.b16 %v256
    %v545 = vpack.c.b16 %v365, %v353
    %v546 = vpack.c.b16 %v366, %v354
    %v547 = vpack.c.b16 %v367, %v355
    %v548 = vpack.c.b16 %v368, %v356
    %v549 = vpack.c.b16 %v369, %v357
    %v550 = vpack.c.b16 %v370, %v358
    %v551 = vpack.c.b16 %v371, %v359
    %v552 = vpack.c.b16 %v372, %v360
    %v553 = vpack.c.b16 %v373, %v361
    %v554 = vpack.c.b16 %v374, %v362
    %v555 = vpack.c.b16 %v375, %v363
    %v556 = vpack.c.b16 %v376, %v364
    %v557 = vpack.c.b16 %v389, %v377
    %v558 = vpack.c.b16 %v390, %v378
    %v559 = vpack.c.b16 %v391, %v379
    %v560 = vpack.c.b16 %v392, %v380
    %v561 = vpack.c.b16 %v393, %v381
    %v562 = vpack.c.b16 %v394, %v382
    %v563 = vpack.c.b16 %v395, %v383
    %v564 = vpack.c.b16 %v396, %v384
    %v565 = vpack.c.b16 %v397, %v385
    %v566 = vpack.c.b16 %v398, %v386
    %v567 = vpack.c.b16 %v399, %v387
    %v568 = vpack.c.b16 %v400, %v388
    %v569 = vpack.c.b16 %v413, %v401
    %v570 = vpack.c.b16 %v414, %v402
    %v571 = vpack.c.b16 %v415, %v403
    %v572 = vpack.c.b16 %v416, %v404
    %v573 = vpack.c.b16 %v417, %v405
    %v574 = vpack.c.b16 %v418, %v406
    %v575 = vpack.c.b16 %v419, %v407
    %v576 = vpack.c.b16 %v420, %v408
    %v577 = vpack.c.b16 %v421, %v409
    %v578 = vpack.c.b16 %v422, %v410
    %v579 = vpack.c.b16 %v423, %v411
    %v580 = vpack.c.b16 %v424, %v412
    %v581 = vpack.c.b16 %v437, %v425
    %v582 = vpack.c.b16 %v438, %v426
    %v583 = vpack.c.b16 %v439, %v427
    %v584 = vpack.c.b16 %v440, %v428
    %v585 = vpack.c.b16 %v441, %v429
    %v586 = vpack.c.b16 %v442, %v430
    %v587 = vpack.c.b16 %v443, %v431
    %v588 = vpack.c.b16 %v444, %v432
    %v589 = vpack.c.b16 %v445, %v433
    %v590 = vpack.c.b16 %v446, %v434
    %v591 = vpack.c.b16 %v447, %v435
    %v592 = vpack.c.b16 %v448, %v436
    %v593 = vpack.c.b16 %v461, %v449
    %v594 = vpack.c.b16 %v462, %v450
    %v595 = vpack.c.b16 %v463, %v451
    %v596 = vpack.c.b16 %v464, %v452
    %v597 = vpack.c.b16 %v465, %v453
    %v598 = vpack.c.b16 %v466, %v454
    %v599 = vpack.c.b16 %v467, %v455
    %v600 = vpack.c.b16 %v468, %v456
    %v601 = vpack.c.b16 %v469, %v457
    %v602 = vpack.c.b16 %v470, %v458
    %v603 = vpack.c.b16 %v471, %v459
    %v604 = vpack.c.b16 %v472, %v460
    %v605 = vpack.c.b16 %v485, %v473
    %v606 = vpack.c.b16 %v486, %v474
    %v607 = vpack.c.b16 %v487, %v475
    %v608 = vpack.c.b16 %v488, %v476
    %v609 = vpack.c.b16 %v489, %v477
    %v610 = vpack.c.b16 %v490, %v478
    %v611 = vpack.c.b16 %v491, %v479
    %v612 = vpack.c.b16 %v492, %v480
    %v613 = vpack.c.b16 %v493, %v481
    %v614 = vpack.c.b16 %v494, %v482
    %v615 = vpack.c.b16 %v495, %v483
    %v616 = vpack.c.b16 %v496, %v484
    %v617 = vpack.c.b16 %v509, %v497
    %v618 = vpack.c.b16 %v510, %v498
    %v619 = vpack.c.b16 %v511, %v499
    %v620 = vpack.c.b16 %v512, %v500
    %v621 = vpack.c.b16 %v513, %v501
    %v622 = vpack.c.b16 %v514, %v502
    %v623 = vpack.c.b16 %v515, %v503
    %v624 = vpack.c.b16 %v516, %v504
    %v625 = vpack.c.b16 %v517, %v505
    %v626 = vpack.c.b16 %v518, %v506
    %v627 = vpack.c.b16 %v519, %v507
    %v628 = vpack.c.b16 %v520, %v508
    %v629 = vpack.c.b16 %v533, %v521
    %v630 = vpack.c.b16 %v534, %v522
    %v631 = vpack.c.b16 %v535, %v523
    %v632 = vpack.c.b16 %v536, %v524
    %v633 = vpack.c.b16 %v537, %v525
    %v634 = vpack.c.b16 %v538, %v526
    %v635 = vpack.c.b16 %v539, %v527
    %v636 = vpack.c.b16 %v540, %v528
    %v637 = vpack.c.b16 %v541, %v529
    %v638 = vpack.c.b16 %v542, %v530
    %v639 = vpack.c.b16 %v543, %v531
    %v640 = vpack.c.b16 %v544, %v532
    %737 = vmatprep.subr.bf16.mxu0 %v630
    %738 = vmatpush1.bf16.msra.mxu0 %v629
    %739 = vmatprep.subr.bf16.mxu0 %v618
    %740 = vmatpush1.bf16.msra.mxu0 %v617
    %741 = vmatprep.subr.bf16.mxu0 %v606
    %742 = vmatpush1.bf16.msra.mxu0 %v605
    %743 = vmatprep.subr.bf16.mxu0 %v594
    %744 = vmatpush1.bf16.msra.mxu0 %v593
    %745 = vmatprep.subr.bf16.mxu0 %v582
    %746 = vmatpush1.bf16.msra.mxu0 %v581
    %747 = vmatprep.subr.bf16.mxu0 %v570
    %748 = vmatpush1.bf16.msra.mxu0 %v569
    %749 = vmatprep.subr.bf16.mxu0 %v558
    %750 = vmatpush1.bf16.msra.mxu0 %v557
    %751 = vmatprep.subr.bf16.mxu0 %v546
    %752 = vmatpush1.bf16.msra.mxu0 %v545
    %753 = vmatprep.subr.bf16.mxu0 0
    %754 = vmatpush2.bf16.msra.mxu0 0
    %755 = vmatprep.subr.bf16.mxu0 0
    %756 = vmatpush2.bf16.msra.mxu0 0
    %757 = vmatprep.subr.bf16.mxu0 0
    %758 = vmatpush2.bf16.msra.mxu0 0
    %759 = vmatprep.subr.bf16.mxu0 0
    %760 = vmatpush2.bf16.msra.mxu0 0
    %761 = vmatprep.subr.bf16.mxu0 0
    %762 = vmatpush2.bf16.msra.mxu0 0
    %763 = vmatprep.subr.bf16.mxu0 0
    %764 = vmatpush2.bf16.msra.mxu0 0
    %765 = vmatprep.subr.bf16.mxu0 0
    %766 = vmatpush2.bf16.msra.mxu0 0
    %767 = vmatprep.subr.bf16.mxu0 0
    %768 = vmatpush2.bf16.msra.mxu0 0
    %769 = vmatprep.mubr.bf16.mxu0 0
    %770 = vmatmul.mubr.bf16.gmra.mxu0 %v160
    %v771 = vpop.f32.mrf.mxu0
    %v772 = vadd.f32 0.0, %v771
    %v773 = vpop.f32.mrf.mxu0
    %v774 = vadd.f32 0.0, %v773
    %v775 = vpop.f32.mrf.mxu0
    %v776 = vadd.f32 0.0, %v775
    %v777 = vpop.f32.mrf.mxu0
    %v778 = vadd.f32 0.0, %v777
    %779 = vdwg.mxu0
    %780 = vmatprep.subr.bf16.mxu0 %v632
    %781 = vmatpush1.bf16.msra.mxu0 %v631
    %782 = vmatprep.subr.bf16.mxu0 %v620
    %783 = vmatpush1.bf16.msra.mxu0 %v619
    %784 = vmatprep.subr.bf16.mxu0 %v608
    %785 = vmatpush1.bf16.msra.mxu0 %v607
    %786 = vmatprep.subr.bf16.mxu0 %v596
    %787 = vmatpush1.bf16.msra.mxu0 %v595
    %788 = vmatprep.subr.bf16.mxu0 %v584
    %789 = vmatpush1.bf16.msra.mxu0 %v583
    %790 = vmatprep.subr.bf16.mxu0 %v572
    %791 = vmatpush1.bf16.msra.mxu0 %v571
    %792 = vmatprep.subr.bf16.mxu0 %v560
    %793 = vmatpush1.bf16.msra.mxu0 %v559
    %794 = vmatprep.subr.bf16.mxu0 %v548
    %795 = vmatpush1.bf16.msra.mxu0 %v547
    %796 = vmatprep.subr.bf16.mxu0 0
    %797 = vmatpush2.bf16.msra.mxu0 0
    %798 = vmatprep.subr.bf16.mxu0 0
    %799 = vmatpush2.bf16.msra.mxu0 0
    %800 = vmatprep.subr.bf16.mxu0 0
    %801 = vmatpush2.bf16.msra.mxu0 0
    %802 = vmatprep.subr.bf16.mxu0 0
    %803 = vmatpush2.bf16.msra.mxu0 0
    %804 = vmatprep.subr.bf16.mxu0 0
    %805 = vmatpush2.bf16.msra.mxu0 0
    %806 = vmatprep.subr.bf16.mxu0 0
    %807 = vmatpush2.bf16.msra.mxu0 0
    %808 = vmatprep.subr.bf16.mxu0 0
    %809 = vmatpush2.bf16.msra.mxu0 0
    %810 = vmatprep.subr.bf16.mxu0 0
    %811 = vmatpush2.bf16.msra.mxu0 0
    %812 = vmatprep.mubr.bf16.mxu0 0
    %813 = vmatmul.mubr.bf16.gmra.mxu0 %v160
    %v814 = vpop.f32.mrf.mxu0
    %v815 = vadd.f32 0.0, %v814
    %v816 = vpop.f32.mrf.mxu0
    %v817 = vadd.f32 0.0, %v816
    %v818 = vpop.f32.mrf.mxu0
    %v819 = vadd.f32 0.0, %v818
    %v820 = vpop.f32.mrf.mxu0
    %v821 = vadd.f32 0.0, %v820
    %822 = vdwg.mxu0
    %823 = vmatprep.subr.bf16.mxu0 %v634
    %824 = vmatpush1.bf16.msra.mxu0 %v633
    %825 = vmatprep.subr.bf16.mxu0 %v622
    %826 = vmatpush1.bf16.msra.mxu0 %v621
    %827 = vmatprep.subr.bf16.mxu0 %v610
    %828 = vmatpush1.bf16.msra.mxu0 %v609
    %829 = vmatprep.subr.bf16.mxu0 %v598
    %830 = vmatpush1.bf16.msra.mxu0 %v597
    %831 = vmatprep.subr.bf16.mxu0 %v586
    %832 = vmatpush1.bf16.msra.mxu0 %v585
    %833 = vmatprep.subr.bf16.mxu0 %v574
    %834 = vmatpush1.bf16.msra.mxu0 %v573
    %835 = vmatprep.subr.bf16.mxu0 %v562
    %836 = vmatpush1.bf16.msra.mxu0 %v561
    %837 = vmatprep.subr.bf16.mxu0 %v550
    %838 = vmatpush1.bf16.msra.mxu0 %v549
    %839 = vmatprep.subr.bf16.mxu0 0
    %840 = vmatpush2.bf16.msra.mxu0 0
    %841 = vmatprep.subr.bf16.mxu0 0
    %842 = vmatpush2.bf16.msra.mxu0 0
    %843 = vmatprep.subr.bf16.mxu0 0
    %844 = vmatpush2.bf16.msra.mxu0 0
    %845 = vmatprep.subr.bf16.mxu0 0
    %846 = vmatpush2.bf16.msra.mxu0 0
    %847 = vmatprep.subr.bf16.mxu0 0
    %848 = vmatpush2.bf16.msra.mxu0 0
    %849 = vmatprep.subr.bf16.mxu0 0
    %850 = vmatpush2.bf16.msra.mxu0 0
    %851 = vmatprep.subr.bf16.mxu0 0
    %852 = vmatpush2.bf16.msra.mxu0 0
    %853 = vmatprep.subr.bf16.mxu0 0
    %854 = vmatpush2.bf16.msra.mxu0 0
    %855 = vmatprep.mubr.bf16.mxu0 0
    %856 = vmatmul.mubr.bf16.gmra.mxu0 %v160
    %v857 = vpop.f32.mrf.mxu0
    %v858 = vadd.f32 0.0, %v857
    %v859 = vpop.f32.mrf.mxu0
    %v860 = vadd.f32 0.0, %v859
    %v861 = vpop.f32.mrf.mxu0
    %v862 = vadd.f32 0.0, %v861
    %v863 = vpop.f32.mrf.mxu0
    %v864 = vadd.f32 0.0, %v863
    %865 = vdwg.mxu0
    %866 = vmatprep.subr.bf16.mxu0 %v636
    %867 = vmatpush1.bf16.msra.mxu0 %v635
    %868 = vmatprep.subr.bf16.mxu0 %v624
    %869 = vmatpush1.bf16.msra.mxu0 %v623
    %870 = vmatprep.subr.bf16.mxu0 %v612
    %871 = vmatpush1.bf16.msra.mxu0 %v611
    %872 = vmatprep.subr.bf16.mxu0 %v600
    %873 = vmatpush1.bf16.msra.mxu0 %v599
    %874 = vmatprep.subr.bf16.mxu0 %v588
    %875 = vmatpush1.bf16.msra.mxu0 %v587
    %876 = vmatprep.subr.bf16.mxu0 %v576
    %877 = vmatpush1.bf16.msra.mxu0 %v575
    %878 = vmatprep.subr.bf16.mxu0 %v564
    %879 = vmatpush1.bf16.msra.mxu0 %v563
    %880 = vmatprep.subr.bf16.mxu0 %v552
    %881 = vmatpush1.bf16.msra.mxu0 %v551
    %882 = vmatprep.subr.bf16.mxu0 0
    %883 = vmatpush2.bf16.msra.mxu0 0
    %884 = vmatprep.subr.bf16.mxu0 0
    %885 = vmatpush2.bf16.msra.mxu0 0
    %886 = vmatprep.subr.bf16.mxu0 0
    %887 = vmatpush2.bf16.msra.mxu0 0
    %888 = vmatprep.subr.bf16.mxu0 0
    %889 = vmatpush2.bf16.msra.mxu0 0
    %890 = vmatprep.subr.bf16.mxu0 0
    %891 = vmatpush2.bf16.msra.mxu0 0
    %892 = vmatprep.subr.bf16.mxu0 0
    %893 = vmatpush2.bf16.msra.mxu0 0
    %894 = vmatprep.subr.bf16.mxu0 0
    %895 = vmatpush2.bf16.msra.mxu0 0
    %896 = vmatprep.subr.bf16.mxu0 0
    %897 = vmatpush2.bf16.msra.mxu0 0
    %898 = vmatprep.mubr.bf16.mxu0 0
    %899 = vmatmul.mubr.bf16.gmra.mxu0 %v160
    %v900 = vpop.f32.mrf.mxu0
    %v901 = vadd.f32 0.0, %v900
    %v902 = vpop.f32.mrf.mxu0
    %v903 = vadd.f32 0.0, %v902
    %v904 = vpop.f32.mrf.mxu0
    %v905 = vadd.f32 0.0, %v904
    %v906 = vpop.f32.mrf.mxu0
    %v907 = vadd.f32 0.0, %v906
    %908 = vdwg.mxu0
    %909 = vmatprep.subr.bf16.mxu0 %v638
    %910 = vmatpush1.bf16.msra.mxu0 %v637
    %911 = vmatprep.subr.bf16.mxu0 %v626
    %912 = vmatpush1.bf16.msra.mxu0 %v625
    %913 = vmatprep.subr.bf16.mxu0 %v614
    %914 = vmatpush1.bf16.msra.mxu0 %v613
    %915 = vmatprep.subr.bf16.mxu0 %v602
    %916 = vmatpush1.bf16.msra.mxu0 %v601
    %917 = vmatprep.subr.bf16.mxu0 %v590
    %918 = vmatpush1.bf16.msra.mxu0 %v589
    %919 = vmatprep.subr.bf16.mxu0 %v578
    %920 = vmatpush1.bf16.msra.mxu0 %v577
    %921 = vmatprep.subr.bf16.mxu0 %v566
    %922 = vmatpush1.bf16.msra.mxu0 %v565
    %923 = vmatprep.subr.bf16.mxu0 %v554
    %924 = vmatpush1.bf16.msra.mxu0 %v553
    %925 = vmatprep.subr.bf16.mxu0 0
    %926 = vmatpush2.bf16.msra.mxu0 0
    %927 = vmatprep.subr.bf16.mxu0 0
    %928 = vmatpush2.bf16.msra.mxu0 0
    %929 = vmatprep.subr.bf16.mxu0 0
    %930 = vmatpush2.bf16.msra.mxu0 0
    %931 = vmatprep.subr.bf16.mxu0 0
    %932 = vmatpush2.bf16.msra.mxu0 0
    %933 = vmatprep.subr.bf16.mxu0 0
    %934 = vmatpush2.bf16.msra.mxu0 0
    %935 = vmatprep.subr.bf16.mxu0 0
    %936 = vmatpush2.bf16.msra.mxu0 0
    %937 = vmatprep.subr.bf16.mxu0 0
    %938 = vmatpush2.bf16.msra.mxu0 0
    %939 = vmatprep.subr.bf16.mxu0 0
    %940 = vmatpush2.bf16.msra.mxu0 0
    %941 = vmatprep.mubr.bf16.mxu0 0
    %942 = vmatmul.mubr.bf16.gmra.mxu0 %v160
    %v943 = vpop.f32.mrf.mxu0
    %v944 = vadd.f32 0.0, %v943
    %v945 = vpop.f32.mrf.mxu0
    %v946 = vadd.f32 0.0, %v945
    %v947 = vpop.f32.mrf.mxu0
    %v948 = vadd.f32 0.0, %v947
    %v949 = vpop.f32.mrf.mxu0
    %v950 = vadd.f32 0.0, %v949
    %951 = vdwg.mxu0
    %952 = vmatprep.subr.bf16.mxu0 %v640
    %953 = vmatpush1.bf16.msra.mxu0 %v639
    %954 = vmatprep.subr.bf16.mxu0 %v628
    %955 = vmatpush1.bf16.msra.mxu0 %v627
    %956 = vmatprep.subr.bf16.mxu0 %v616
    %957 = vmatpush1.bf16.msra.mxu0 %v615
    %958 = vmatprep.subr.bf16.mxu0 %v604
    %959 = vmatpush1.bf16.msra.mxu0 %v603
    %960 = vmatprep.subr.bf16.mxu0 %v592
    %961 = vmatpush1.bf16.msra.mxu0 %v591
    %962 = vmatprep.subr.bf16.mxu0 %v580
    %963 = vmatpush1.bf16.msra.mxu0 %v579
    %964 = vmatprep.subr.bf16.mxu0 %v568
    %965 = vmatpush1.bf16.msra.mxu0 %v567
    %966 = vmatprep.subr.bf16.mxu0 %v556
    %967 = vmatpush1.bf16.msra.mxu0 %v555
    %968 = vmatprep.subr.bf16.mxu0 0
    %969 = vmatpush2.bf16.msra.mxu0 0
    %970 = vmatprep.subr.bf16.mxu0 0
    %971 = vmatpush2.bf16.msra.mxu0 0
    %972 = vmatprep.subr.bf16.mxu0 0
    %973 = vmatpush2.bf16.msra.mxu0 0
    %974 = vmatprep.subr.bf16.mxu0 0
    %975 = vmatpush2.bf16.msra.mxu0 0
    %976 = vmatprep.subr.bf16.mxu0 0
    %977 = vmatpush2.bf16.msra.mxu0 0
    %978 = vmatprep.subr.bf16.mxu0 0
    %979 = vmatpush2.bf16.msra.mxu0 0
    %980 = vmatprep.subr.bf16.mxu0 0
    %981 = vmatpush2.bf16.msra.mxu0 0
    %982 = vmatprep.subr.bf16.mxu0 0
    %983 = vmatpush2.bf16.msra.mxu0 0
    %984 = vmatprep.mubr.bf16.mxu0 0
    %985 = vmatmul.mubr.bf16.gmra.mxu0 %v160
    %v986 = vpop.f32.mrf.mxu0
    %v987 = vadd.f32 0.0, %v986
    %v988 = vpop.f32.mrf.mxu0
    %v989 = vadd.f32 0.0, %v988
    %v990 = vpop.f32.mrf.mxu0
    %v991 = vadd.f32 0.0, %v990
    %v992 = vpop.f32.mrf.mxu0
    %v993 = vadd.f32 0.0, %v992
    %994 = vdwg.mxu0
    %v995 = vld [vmem:[#allocation8] sm:$0xf]
    %v996 = vld [vmem:[#allocation8 + $0x4] sm:$0xf]
    %v997 = vld [vmem:[#allocation8 + $0x8] sm:$0xf]
    %v998 = vld [vmem:[#allocation8 + $0xc] sm:$0xf]
    %v999 = vld [vmem:[#allocation8 + $0x10] sm:$0xf]
    %v1000 = vld [vmem:[#allocation8 + $0x14] sm:$0xf]
    %v1001 = vld [vmem:[#allocation8 + $0x18] sm:$0xf]
    %v1002 = vld [vmem:[#allocation8 + $0x1c] sm:$0xf]
    %v1003 = vld [vmem:[#allocation8 + $0x20] sm:$0xf]
    %v1004 = vld [vmem:[#allocation8 + $0x24] sm:$0xf]
    %v1005 = vld [vmem:[#allocation8 + $0x28] sm:$0xf]
    %v1006 = vld [vmem:[#allocation8 + $0x2c] sm:$0xf]
    %v1007 = vld [vmem:[#allocation8 + $0x30] sm:$0xf]
    %v1008 = vld [vmem:[#allocation8 + $0x34] sm:$0xf]
    %v1009 = vld [vmem:[#allocation8 + $0x38] sm:$0xf]
    %v1010 = vld [vmem:[#allocation8 + $0x3c] sm:$0xf]
    %v1011 = vpack.c.bf16 %v772, %v772
    %v1012 = vpack.c.bf16 %v858, %v858
    %v1013 = vpack.c.bf16 %v944, %v944
    %1014 = vmatprep.subr.bf16.mxu0 0
    %1015 = vmatpush1.bf16.xpose.msra.mxu0 0
    %1016 = vmatprep.subr.bf16.mxu0 0
    %1017 = vmatpush1.bf16.xpose.msra.mxu0 0
    %1018 = vmatprep.subr.bf16.mxu0 0
    %1019 = vmatpush1.bf16.xpose.msra.mxu0 0
    %1020 = vmatprep.subr.bf16.mxu0 0
    %1021 = vmatpush1.bf16.xpose.msra.mxu0 0
    %1022 = vmatprep.subr.bf16.mxu0 0
    %1023 = vmatpush1.bf16.xpose.msra.mxu0 0
    %1024 = vmatprep.subr.bf16.mxu0 0
    %1025 = vmatpush1.bf16.xpose.msra.mxu0 0
    %1026 = vmatprep.subr.bf16.mxu0 0
    %1027 = vmatpush1.bf16.xpose.msra.mxu0 0
    %1028 = vmatprep.subr.bf16.mxu0 0
    %1029 = vmatpush1.bf16.xpose.msra.mxu0 %v1012
    %1030 = vmatprep.subr.bf16.mxu0 0
    %1031 = vmatpush2.bf16.xpose.msra.mxu0 0
    %1032 = vmatprep.subr.bf16.mxu0 0
    %1033 = vmatpush2.bf16.xpose.msra.mxu0 0
    %1034 = vmatprep.subr.bf16.mxu0 0
    %1035 = vmatpush2.bf16.xpose.msra.mxu0 0
    %1036 = vmatprep.subr.bf16.mxu0 0
    %1037 = vmatpush2.bf16.xpose.msra.mxu0 0
    %1038 = vmatprep.subr.bf16.mxu0 0
    %1039 = vmatpush2.bf16.xpose.msra.mxu0 0
    %1040 = vmatprep.subr.bf16.mxu0 0
    %1041 = vmatpush2.bf16.xpose.msra.mxu0 0
    %1042 = vmatprep.subr.bf16.mxu0 0
    %1043 = vmatpush2.bf16.xpose.msra.mxu0 0
    %1044 = vmatprep.subr.bf16.mxu0 0
    %1045 = vmatpush2.bf16.xpose.msra.mxu0 0
    %1046 = vmatprep.mubr.bf16.mxu0 0
    %1047 = vmatmul.mubr.bf16.gmra.mxu0 %v1011
    %v1048 = vpop.f32.mrf.mxu0
    %v1049 = vadd.f32 0.0, %v1048
    %v1050 = vpop.f32.mrf.mxu0
    %v1051 = vpop.f32.mrf.mxu0
    %v1052 = vpop.f32.mrf.mxu0
    %1053 = vdwg.mxu0
    %vm1054 = vcmask 64512
    %v1055 = vsel %vm1054, %v1049, -inf
    %1056 = vmax.xlane.f32.xlu0 %v1055
    %v1057 = vpop.xlane.xlu0 %1056
    %v1058 = vsub.f32 %v1049, %v1057
    %v1059 = vmul.f32 %v1058, 1.442695
    %v1060 = vpow.pop %v1059
    %v1061 = vsel %vm1054, %v1060, 0.0
    %1062 = vadd.xlane.f32.xlu0 %v1061
    %v1063 = vpop.xlane.xlu0 %1062
    %v1064 = vrcp.pop %v1063
    %v1065 = vmul.f32 %v1060, %v1064
    %v1066 = vpack.c.bf16 %v1065, %v1065
    %v1068 = vsel %vm1054, %v1066, 0
    %vm1070 = vcmask 1043456
    %v1072 = vsel %vm1070, %v1013, 0
    %1074 = vmatprep.subr.bf16.mxu0 0
    %1075 = vmatpush1.bf16.msra.mxu0 0
    %1076 = vmatprep.subr.bf16.mxu0 0
    %1077 = vmatpush1.bf16.msra.mxu0 0
    %1078 = vmatprep.subr.bf16.mxu0 0
    %1079 = vmatpush1.bf16.msra.mxu0 0
    %1080 = vmatprep.subr.bf16.mxu0 0
    %1081 = vmatpush1.bf16.msra.mxu0 0
    %1082 = vmatprep.subr.bf16.mxu0 0
    %1083 = vmatpush1.bf16.msra.mxu0 0
    %1084 = vmatprep.subr.bf16.mxu0 0
    %1085 = vmatpush1.bf16.msra.mxu0 0
    %1086 = vmatprep.subr.bf16.mxu0 0
    %1087 = vmatpush1.bf16.msra.mxu0 0
    %1088 = vmatprep.subr.bf16.mxu0 0
    %1089 = vmatpush1.bf16.msra.mxu0 %v1072
    %1090 = vmatprep.subr.bf16.mxu0 0
    %1091 = vmatpush2.bf16.msra.mxu0 0
    %1092 = vmatprep.subr.bf16.mxu0 0
    %1093 = vmatpush2.bf16.msra.mxu0 0
    %1094 = vmatprep.subr.bf16.mxu0 0
    %1095 = vmatpush2.bf16.msra.mxu0 0
    %1096 = vmatprep.subr.bf16.mxu0 0
    %1097 = vmatpush2.bf16.msra.mxu0 0
    %1098 = vmatprep.subr.bf16.mxu0 0
    %1099 = vmatpush2.bf16.msra.mxu0 0
    %1100 = vmatprep.subr.bf16.mxu0 0
    %1101 = vmatpush2.bf16.msra.mxu0 0
    %1102 = vmatprep.subr.bf16.mxu0 0
    %1103 = vmatpush2.bf16.msra.mxu0 0
    %1104 = vmatprep.subr.bf16.mxu0 0
    %1105 = vmatpush2.bf16.msra.mxu0 0
    %1106 = vmatprep.mubr.bf16.mxu0 0
    %1107 = vmatmul.mubr.bf16.gmra.mxu0 %v1068
    %v1108 = vpop.f32.mrf.mxu0
    %v1109 = vadd.f32 0.0, %v1108
    %v1110 = vpop.f32.mrf.mxu0
    %v1111 = vpop.f32.mrf.mxu0
    %v1112 = vpop.f32.mrf.mxu0
    %1113 = vdwg.mxu0
    %v1114 = vpack.c.bf16 %v776, %v776
    %v1115 = vpack.c.bf16 %v862, %v862
    %v1116 = vpack.c.bf16 %v948, %v948
    %1117 = vmatprep.subr.bf16.mxu0 0
    %1118 = vmatpush1.bf16.xpose.msra.mxu0 0
    %1119 = vmatprep.subr.bf16.mxu0 0
    %1120 = vmatpush1.bf16.xpose.msra.mxu0 0
    %1121 = vmatprep.subr.bf16.mxu0 0
    %1122 = vmatpush1.bf16.xpose.msra.mxu0 0
    %1123 = vmatprep.subr.bf16.mxu0 0
    %1124 = vmatpush1.bf16.xpose.msra.mxu0 0
    %1125 = vmatprep.subr.bf16.mxu0 0
    %1126 = vmatpush1.bf16.xpose.msra.mxu0 0
    %1127 = vmatprep.subr.bf16.mxu0 0
    %1128 = vmatpush1.bf16.xpose.msra.mxu0 0
    %1129 = vmatprep.subr.bf16.mxu0 0
    %1130 = vmatpush1.bf16.xpose.msra.mxu0 0
    %1131 = vmatprep.subr.bf16.mxu0 0
    %1132 = vmatpush1.bf16.xpose.msra.mxu0 %v1115
    %1133 = vmatprep.subr.bf16.mxu0 0
    %1134 = vmatpush2.bf16.xpose.msra.mxu0 0
    %1135 = vmatprep.subr.bf16.mxu0 0
    %1136 = vmatpush2.bf16.xpose.msra.mxu0 0
    %1137 = vmatprep.subr.bf16.mxu0 0
    %1138 = vmatpush2.bf16.xpose.msra.mxu0 0
    %1139 = vmatprep.subr.bf16.mxu0 0
    %1140 = vmatpush2.bf16.xpose.msra.mxu0 0
    %1141 = vmatprep.subr.bf16.mxu0 0
    %1142 = vmatpush2.bf16.xpose.msra.mxu0 0
    %1143 = vmatprep.subr.bf16.mxu0 0
    %1144 = vmatpush2.bf16.xpose.msra.mxu0 0
    %1145 = vmatprep.subr.bf16.mxu0 0
    %1146 = vmatpush2.bf16.xpose.msra.mxu0 0
    %1147 = vmatprep.subr.bf16.mxu0 0
    %1148 = vmatpush2.bf16.xpose.msra.mxu0 0
    %1149 = vmatprep.mubr.bf16.mxu0 0
    %1150 = vmatmul.mubr.bf16.gmra.mxu0 %v1114
    %v1151 = vpop.f32.mrf.mxu0
    %v1152 = vadd.f32 0.0, %v1151
    %v1153 = vpop.f32.mrf.mxu0
    %v1154 = vpop.f32.mrf.mxu0
    %v1155 = vpop.f32.mrf.mxu0
    %1156 = vdwg.mxu0
    %v1157 = vsel %vm1054, %v1152, -inf
    %1158 = vmax.xlane.f32.xlu0 %v1157
    %v1159 = vpop.xlane.xlu0 %1158
    %v1160 = vsub.f32 %v1152, %v1159
    %v1161 = vmul.f32 %v1160, 1.442695
    %v1162 = vpow.pop %v1161
    %v1163 = vsel %vm1054, %v1162, 0.0
    %1164 = vadd.xlane.f32.xlu0 %v1163
    %v1165 = vpop.xlane.xlu0 %1164
    %v1166 = vrcp.pop %v1165
    %v1167 = vmul.f32 %v1162, %v1166
    %v1168 = vpack.c.bf16 %v1167, %v1167
    %v1170 = vsel %vm1054, %v1168, 0
    %v1173 = vsel %vm1070, %v1116, 0
    %1175 = vmatprep.subr.bf16.mxu0 0
    %1176 = vmatpush1.bf16.msra.mxu0 0
    %1177 = vmatprep.subr.bf16.mxu0 0
    %1178 = vmatpush1.bf16.msra.mxu0 0
    %1179 = vmatprep.subr.bf16.mxu0 0
    %1180 = vmatpush1.bf16.msra.mxu0 0
    %1181 = vmatprep.subr.bf16.mxu0 0
    %1182 = vmatpush1.bf16.msra.mxu0 0
    %1183 = vmatprep.subr.bf16.mxu0 0
    %1184 = vmatpush1.bf16.msra.mxu0 0
    %1185 = vmatprep.subr.bf16.mxu0 0
    %1186 = vmatpush1.bf16.msra.mxu0 0
    %1187 = vmatprep.subr.bf16.mxu0 0
    %1188 = vmatpush1.bf16.msra.mxu0 0
    %1189 = vmatprep.subr.bf16.mxu0 0
    %1190 = vmatpush1.bf16.msra.mxu0 %v1173
    %1191 = vmatprep.subr.bf16.mxu0 0
    %1192 = vmatpush2.bf16.msra.mxu0 0
    %1193 = vmatprep.subr.bf16.mxu0 0
    %1194 = vmatpush2.bf16.msra.mxu0 0
    %1195 = vmatprep.subr.bf16.mxu0 0
    %1196 = vmatpush2.bf16.msra.mxu0 0
    %1197 = vmatprep.subr.bf16.mxu0 0
    %1198 = vmatpush2.bf16.msra.mxu0 0
    %1199 = vmatprep.subr.bf16.mxu0 0
    %1200 = vmatpush2.bf16.msra.mxu0 0
    %1201 = vmatprep.subr.bf16.mxu0 0
    %1202 = vmatpush2.bf16.msra.mxu0 0
    %1203 = vmatprep.subr.bf16.mxu0 0
    %1204 = vmatpush2.bf16.msra.mxu0 0
    %1205 = vmatprep.subr.bf16.mxu0 0
    %1206 = vmatpush2.bf16.msra.mxu0 0
    %1207 = vmatprep.mubr.bf16.mxu0 0
    %1208 = vmatmul.mubr.bf16.gmra.mxu0 %v1170
    %v1209 = vpop.f32.mrf.mxu0
    %v1210 = vadd.f32 0.0, %v1209
    %v1211 = vpop.f32.mrf.mxu0
    %v1212 = vpop.f32.mrf.mxu0
    %v1213 = vpop.f32.mrf.mxu0
    %1214 = vdwg.mxu0
    %v1215 = vpack.c.bf16 %v1210, %v1109
    %v1216 = vld [vmem:[#allocation8 + $0x40] sm:$0xf]
    %v1217 = vld [vmem:[#allocation8 + $0x44] sm:$0xf]
    %v1218 = vld [vmem:[#allocation8 + $0x48] sm:$0xf]
    %v1219 = vld [vmem:[#allocation8 + $0x4c] sm:$0xf]
    %v1220 = vld [vmem:[#allocation8 + $0x50] sm:$0xf]
    %v1221 = vld [vmem:[#allocation8 + $0x54] sm:$0xf]
    %v1222 = vld [vmem:[#allocation8 + $0x58] sm:$0xf]
    %v1223 = vld [vmem:[#allocation8 + $0x5c] sm:$0xf]
    %v1224 = vld [vmem:[#allocation8 + $0x60] sm:$0xf]
    %v1225 = vld [vmem:[#allocation8 + $0x64] sm:$0xf]
    %v1226 = vld [vmem:[#allocation8 + $0x68] sm:$0xf]
    %v1227 = vld [vmem:[#allocation8 + $0x6c] sm:$0xf]
    %v1228 = vld [vmem:[#allocation8 + $0x70] sm:$0xf]
    %v1229 = vld [vmem:[#allocation8 + $0x74] sm:$0xf]
    %v1230 = vld [vmem:[#allocation8 + $0x78] sm:$0xf]
    %v1231 = vld [vmem:[#allocation8 + $0x7c] sm:$0xf]
    %v1232 = vpack.c.bf16 %v774, %v774
    %v1233 = vpack.c.bf16 %v860, %v860
    %v1234 = vpack.c.bf16 %v946, %v946
    %1235 = vmatprep.subr.bf16.mxu0 0
    %1236 = vmatpush1.bf16.xpose.msra.mxu0 0
    %1237 = vmatprep.subr.bf16.mxu0 0
    %1238 = vmatpush1.bf16.xpose.msra.mxu0 0
    %1239 = vmatprep.subr.bf16.mxu0 0
    %1240 = vmatpush1.bf16.xpose.msra.mxu0 0
    %1241 = vmatprep.subr.bf16.mxu0 0
    %1242 = vmatpush1.bf16.xpose.msra.mxu0 0
    %1243 = vmatprep.subr.bf16.mxu0 0
    %1244 = vmatpush1.bf16.xpose.msra.mxu0 0
    %1245 = vmatprep.subr.bf16.mxu0 0
    %1246 = vmatpush1.bf16.xpose.msra.mxu0 0
    %1247 = vmatprep.subr.bf16.mxu0 0
    %1248 = vmatpush1.bf16.xpose.msra.mxu0 0
    %1249 = vmatprep.subr.bf16.mxu0 0
    %1250 = vmatpush1.bf16.xpose.msra.mxu0 %v1233
    %1251 = vmatprep.subr.bf16.mxu0 0
    %1252 = vmatpush2.bf16.xpose.msra.mxu0 0
    %1253 = vmatprep.subr.bf16.mxu0 0
    %1254 = vmatpush2.bf16.xpose.msra.mxu0 0
    %1255 = vmatprep.subr.bf16.mxu0 0
    %1256 = vmatpush2.bf16.xpose.msra.mxu0 0
    %1257 = vmatprep.subr.bf16.mxu0 0
    %1258 = vmatpush2.bf16.xpose.msra.mxu0 0
    %1259 = vmatprep.subr.bf16.mxu0 0
    %1260 = vmatpush2.bf16.xpose.msra.mxu0 0
    %1261 = vmatprep.subr.bf16.mxu0 0
    %1262 = vmatpush2.bf16.xpose.msra.mxu0 0
    %1263 = vmatprep.subr.bf16.mxu0 0
    %1264 = vmatpush2.bf16.xpose.msra.mxu0 0
    %1265 = vmatprep.subr.bf16.mxu0 0
    %1266 = vmatpush2.bf16.xpose.msra.mxu0 0
    %1267 = vmatprep.mubr.bf16.mxu0 0
    %1268 = vmatmul.mubr.bf16.gmra.mxu0 %v1232
    %v1269 = vpop.f32.mrf.mxu0
    %v1270 = vadd.f32 0.0, %v1269
    %v1271 = vpop.f32.mrf.mxu0
    %v1272 = vpop.f32.mrf.mxu0
    %v1273 = vpop.f32.mrf.mxu0
    %1274 = vdwg.mxu0
    %v1275 = vsel %vm1054, %v1270, -inf
    %1276 = vmax.xlane.f32.xlu0 %v1275
    %v1277 = vpop.xlane.xlu0 %1276
    %v1278 = vsub.f32 %v1270, %v1277
    %v1279 = vmul.f32 %v1278, 1.442695
    %v1280 = vpow.pop %v1279
    %v1281 = vsel %vm1054, %v1280, 0.0
    %1282 = vadd.xlane.f32.xlu0 %v1281
    %v1283 = vpop.xlane.xlu0 %1282
    %v1284 = vrcp.pop %v1283
    %v1285 = vmul.f32 %v1280, %v1284
    %v1286 = vpack.c.bf16 %v1285, %v1285
    %v1288 = vsel %vm1054, %v1286, 0
    %v1291 = vsel %vm1070, %v1234, 0
    %1293 = vmatprep.subr.bf16.mxu0 0
    %1294 = vmatpush1.bf16.msra.mxu0 0
    %1295 = vmatprep.subr.bf16.mxu0 0
    %1296 = vmatpush1.bf16.msra.mxu0 0
    %1297 = vmatprep.subr.bf16.mxu0 0
    %1298 = vmatpush1.bf16.msra.mxu0 0
    %1299 = vmatprep.subr.bf16.mxu0 0
    %1300 = vmatpush1.bf16.msra.mxu0 0
    %1301 = vmatprep.subr.bf16.mxu0 0
    %1302 = vmatpush1.bf16.msra.mxu0 0
    %1303 = vmatprep.subr.bf16.mxu0 0
    %1304 = vmatpush1.bf16.msra.mxu0 0
    %1305 = vmatprep.subr.bf16.mxu0 0
    %1306 = vmatpush1.bf16.msra.mxu0 0
    %1307 = vmatprep.subr.bf16.mxu0 0
    %1308 = vmatpush1.bf16.msra.mxu0 %v1291
    %1309 = vmatprep.subr.bf16.mxu0 0
    %1310 = vmatpush2.bf16.msra.mxu0 0
    %1311 = vmatprep.subr.bf16.mxu0 0
    %1312 = vmatpush2.bf16.msra.mxu0 0
    %1313 = vmatprep.subr.bf16.mxu0 0
    %1314 = vmatpush2.bf16.msra.mxu0 0
    %1315 = vmatprep.subr.bf16.mxu0 0
    %1316 = vmatpush2.bf16.msra.mxu0 0
    %1317 = vmatprep.subr.bf16.mxu0 0
    %1318 = vmatpush2.bf16.msra.mxu0 0
    %1319 = vmatprep.subr.bf16.mxu0 0
    %1320 = vmatpush2.bf16.msra.mxu0 0
    %1321 = vmatprep.subr.bf16.mxu0 0
    %1322 = vmatpush2.bf16.msra.mxu0 0
    %1323 = vmatprep.subr.bf16.mxu0 0
    %1324 = vmatpush2.bf16.msra.mxu0 0
    %1325 = vmatprep.mubr.bf16.mxu0 0
    %1326 = vmatmul.mubr.bf16.gmra.mxu0 %v1288
    %v1327 = vpop.f32.mrf.mxu0
    %v1328 = vadd.f32 0.0, %v1327
    %v1329 = vpop.f32.mrf.mxu0
    %v1330 = vpop.f32.mrf.mxu0
    %v1331 = vpop.f32.mrf.mxu0
    %1332 = vdwg.mxu0
    %v1333 = vpack.c.bf16 %v778, %v778
    %v1334 = vpack.c.bf16 %v864, %v864
    %v1335 = vpack.c.bf16 %v950, %v950
    %1336 = vmatprep.subr.bf16.mxu0 0
    %1337 = vmatpush1.bf16.xpose.msra.mxu0 0
    %1338 = vmatprep.subr.bf16.mxu0 0
    %1339 = vmatpush1.bf16.xpose.msra.mxu0 0
    %1340 = vmatprep.subr.bf16.mxu0 0
    %1341 = vmatpush1.bf16.xpose.msra.mxu0 0
    %1342 = vmatprep.subr.bf16.mxu0 0
    %1343 = vmatpush1.bf16.xpose.msra.mxu0 0
    %1344 = vmatprep.subr.bf16.mxu0 0
    %1345 = vmatpush1.bf16.xpose.msra.mxu0 0
    %1346 = vmatprep.subr.bf16.mxu0 0
    %1347 = vmatpush1.bf16.xpose.msra.mxu0 0
    %1348 = vmatprep.subr.bf16.mxu0 0
    %1349 = vmatpush1.bf16.xpose.msra.mxu0 0
    %1350 = vmatprep.subr.bf16.mxu0 0
    %1351 = vmatpush1.bf16.xpose.msra.mxu0 %v1334
    %1352 = vmatprep.subr.bf16.mxu0 0
    %1353 = vmatpush2.bf16.xpose.msra.mxu0 0
    %1354 = vmatprep.subr.bf16.mxu0 0
    %1355 = vmatpush2.bf16.xpose.msra.mxu0 0
    %1356 = vmatprep.subr.bf16.mxu0 0
    %1357 = vmatpush2.bf16.xpose.msra.mxu0 0
    %1358 = vmatprep.subr.bf16.mxu0 0
    %1359 = vmatpush2.bf16.xpose.msra.mxu0 0
    %1360 = vmatprep.subr.bf16.mxu0 0
    %1361 = vmatpush2.bf16.xpose.msra.mxu0 0
    %1362 = vmatprep.subr.bf16.mxu0 0
    %1363 = vmatpush2.bf16.xpose.msra.mxu0 0
    %1364 = vmatprep.subr.bf16.mxu0 0
    %1365 = vmatpush2.bf16.xpose.msra.mxu0 0
    %1366 = vmatprep.subr.bf16.mxu0 0
    %1367 = vmatpush2.bf16.xpose.msra.mxu0 0
    %1368 = vmatprep.mubr.bf16.mxu0 0
    %1369 = vmatmul.mubr.bf16.gmra.mxu0 %v1333
    %v1370 = vpop.f32.mrf.mxu0
    %v1371 = vadd.f32 0.0, %v1370
    %v1372 = vpop.f32.mrf.mxu0
    %v1373 = vpop.f32.mrf.mxu0
    %v1374 = vpop.f32.mrf.mxu0
    %1375 = vdwg.mxu0
    %v1376 = vsel %vm1054, %v1371, -inf
    %1377 = vmax.xlane.f32.xlu0 %v1376
    %v1378 = vpop.xlane.xlu0 %1377
    %v1379 = vsub.f32 %v1371, %v1378
    %v1380 = vmul.f32 %v1379, 1.442695
    %v1381 = vpow.pop %v1380
    %v1382 = vsel %vm1054, %v1381, 0.0
    %1383 = vadd.xlane.f32.xlu0 %v1382
    %v1384 = vpop.xlane.xlu0 %1383
    %v1385 = vrcp.pop %v1384
    %v1386 = vmul.f32 %v1381, %v1385
    %v1387 = vpack.c.bf16 %v1386, %v1386
    %v1389 = vsel %vm1054, %v1387, 0
    %v1392 = vsel %vm1070, %v1335, 0
    %1394 = vmatprep.subr.bf16.mxu0 0
    %1395 = vmatpush1.bf16.msra.mxu0 0
    %1396 = vmatprep.subr.bf16.mxu0 0
    %1397 = vmatpush1.bf16.msra.mxu0 0
    %1398 = vmatprep.subr.bf16.mxu0 0
    %1399 = vmatpush1.bf16.msra.mxu0 0
    %1400 = vmatprep.subr.bf16.mxu0 0
    %1401 = vmatpush1.bf16.msra.mxu0 0
    %1402 = vmatprep.subr.bf16.mxu0 0
    %1403 = vmatpush1.bf16.msra.mxu0 0
    %1404 = vmatprep.subr.bf16.mxu0 0
    %1405 = vmatpush1.bf16.msra.mxu0 0
    %1406 = vmatprep.subr.bf16.mxu0 0
    %1407 = vmatpush1.bf16.msra.mxu0 0
    %1408 = vmatprep.subr.bf16.mxu0 0
    %1409 = vmatpush1.bf16.msra.mxu0 %v1392
    %1410 = vmatprep.subr.bf16.mxu0 0
    %1411 = vmatpush2.bf16.msra.mxu0 0
    %1412 = vmatprep.subr.bf16.mxu0 0
    %1413 = vmatpush2.bf16.msra.mxu0 0
    %1414 = vmatprep.subr.bf16.mxu0 0
    %1415 = vmatpush2.bf16.msra.mxu0 0
    %1416 = vmatprep.subr.bf16.mxu0 0
    %1417 = vmatpush2.bf16.msra.mxu0 0
    %1418 = vmatprep.subr.bf16.mxu0 0
    %1419 = vmatpush2.bf16.msra.mxu0 0
    %1420 = vmatprep.subr.bf16.mxu0 0
    %1421 = vmatpush2.bf16.msra.mxu0 0
    %1422 = vmatprep.subr.bf16.mxu0 0
    %1423 = vmatpush2.bf16.msra.mxu0 0
    %1424 = vmatprep.subr.bf16.mxu0 0
    %1425 = vmatpush2.bf16.msra.mxu0 0
    %1426 = vmatprep.mubr.bf16.mxu0 0
    %1427 = vmatmul.mubr.bf16.gmra.mxu0 %v1389
    %v1428 = vpop.f32.mrf.mxu0
    %v1429 = vadd.f32 0.0, %v1428
    %v1430 = vpop.f32.mrf.mxu0
    %v1431 = vpop.f32.mrf.mxu0
    %v1432 = vpop.f32.mrf.mxu0
    %1433 = vdwg.mxu0
    %v1434 = vpack.c.bf16 %v1429, %v1328
    %v1451 = vunpack.c.l.b16 %v1216
    %v1452 = vunpack.c.l.b16 %v1217
    %v1453 = vunpack.c.l.b16 %v1218
    %v1454 = vunpack.c.l.b16 %v1219
    %v1455 = vunpack.c.l.b16 %v1220
    %v1456 = vunpack.c.l.b16 %v1221
    %v1457 = vunpack.c.l.b16 %v1222
    %v1458 = vunpack.c.l.b16 %v1223
    %v1459 = vunpack.c.l.b16 %v1224
    %v1460 = vunpack.c.l.b16 %v1225
    %v1461 = vunpack.c.l.b16 %v1226
    %v1462 = vunpack.c.l.b16 %v1227
    %v1463 = vunpack.c.l.b16 %v1228
    %v1464 = vunpack.c.l.b16 %v1229
    %v1465 = vunpack.c.l.b16 %v1230
    %v1466 = vunpack.c.l.b16 %v1231
    %v1467 = vpack.c.b16 %v1452, %v1451
    %v1468 = vpack.c.b16 %v1454, %v1453
    %v1469 = vpack.c.b16 %v1456, %v1455
    %v1470 = vpack.c.b16 %v1458, %v1457
    %v1471 = vpack.c.b16 %v1460, %v1459
    %v1472 = vpack.c.b16 %v1462, %v1461
    %v1473 = vpack.c.b16 %v1464, %v1463
    %v1474 = vpack.c.b16 %v1466, %v1465
    %1483 = vmatprep.subr.bf16.mxu0 0
    %1484 = vmatpush1.bf16.msra.mxu0 %v1474
    %1485 = vmatprep.subr.bf16.mxu0 0
    %1486 = vmatpush1.bf16.msra.mxu0 %v1473
    %1487 = vmatprep.subr.bf16.mxu0 0
    %1488 = vmatpush1.bf16.msra.mxu0 %v1472
    %1489 = vmatprep.subr.bf16.mxu0 0
    %1490 = vmatpush1.bf16.msra.mxu0 %v1471
    %1491 = vmatprep.subr.bf16.mxu0 0
    %1492 = vmatpush1.bf16.msra.mxu0 %v1470
    %1493 = vmatprep.subr.bf16.mxu0 0
    %1494 = vmatpush1.bf16.msra.mxu0 %v1469
    %1495 = vmatprep.subr.bf16.mxu0 0
    %1496 = vmatpush1.bf16.msra.mxu0 %v1468
    %1497 = vmatprep.subr.bf16.mxu0 0
    %1498 = vmatpush1.bf16.msra.mxu0 %v1467
    %1499 = vmatprep.subr.bf16.mxu0 0
    %1500 = vmatpush2.bf16.msra.mxu0 0
    %1501 = vmatprep.subr.bf16.mxu0 0
    %1502 = vmatpush2.bf16.msra.mxu0 0
    %1503 = vmatprep.subr.bf16.mxu0 0
    %1504 = vmatpush2.bf16.msra.mxu0 0
    %1505 = vmatprep.subr.bf16.mxu0 0
    %1506 = vmatpush2.bf16.msra.mxu0 0
    %1507 = vmatprep.subr.bf16.mxu0 0
    %1508 = vmatpush2.bf16.msra.mxu0 0
    %1509 = vmatprep.subr.bf16.mxu0 0
    %1510 = vmatpush2.bf16.msra.mxu0 0
    %1511 = vmatprep.subr.bf16.mxu0 0
    %1512 = vmatpush2.bf16.msra.mxu0 0
    %1513 = vmatprep.subr.bf16.mxu0 0
    %1514 = vmatpush2.bf16.msra.mxu0 0
    %1515 = vmatprep.mubr.bf16.mxu0 0
    %1516 = vmatmul.mubr.bf16.gmra.mxu0 %v1434
    %v1517 = vpop.f32.mrf.mxu0
    %v1518 = vadd.f32 0.0, %v1517
    %v1519 = vpop.f32.mrf.mxu0
    %v1520 = vpop.f32.mrf.mxu0
    %v1521 = vadd.f32 0.0, %v1520
    %v1522 = vpop.f32.mrf.mxu0
    %1523 = vdwg.mxu0
    %v1540 = vunpack.c.l.b16 %v995
    %v1541 = vunpack.c.l.b16 %v996
    %v1542 = vunpack.c.l.b16 %v997
    %v1543 = vunpack.c.l.b16 %v998
    %v1544 = vunpack.c.l.b16 %v999
    %v1545 = vunpack.c.l.b16 %v1000
    %v1546 = vunpack.c.l.b16 %v1001
    %v1547 = vunpack.c.l.b16 %v1002
    %v1548 = vunpack.c.l.b16 %v1003
    %v1549 = vunpack.c.l.b16 %v1004
    %v1550 = vunpack.c.l.b16 %v1005
    %v1551 = vunpack.c.l.b16 %v1006
    %v1552 = vunpack.c.l.b16 %v1007
    %v1553 = vunpack.c.l.b16 %v1008
    %v1554 = vunpack.c.l.b16 %v1009
    %v1555 = vunpack.c.l.b16 %v1010
    %v1556 = vpack.c.b16 %v1541, %v1540
    %v1557 = vpack.c.b16 %v1543, %v1542
    %v1558 = vpack.c.b16 %v1545, %v1544
    %v1559 = vpack.c.b16 %v1547, %v1546
    %v1560 = vpack.c.b16 %v1549, %v1548
    %v1561 = vpack.c.b16 %v1551, %v1550
    %v1562 = vpack.c.b16 %v1553, %v1552
    %v1563 = vpack.c.b16 %v1555, %v1554
    %1572 = vmatprep.subr.bf16.mxu0 0
    %1573 = vmatpush1.bf16.msra.mxu0 %v1563
    %1574 = vmatprep.subr.bf16.mxu0 0
    %1575 = vmatpush1.bf16.msra.mxu0 %v1562
    %1576 = vmatprep.subr.bf16.mxu0 0
    %1577 = vmatpush1.bf16.msra.mxu0 %v1561
    %1578 = vmatprep.subr.bf16.mxu0 0
    %1579 = vmatpush1.bf16.msra.mxu0 %v1560
    %1580 = vmatprep.subr.bf16.mxu0 0
    %1581 = vmatpush1.bf16.msra.mxu0 %v1559
    %1582 = vmatprep.subr.bf16.mxu0 0
    %1583 = vmatpush1.bf16.msra.mxu0 %v1558
    %1584 = vmatprep.subr.bf16.mxu0 0
    %1585 = vmatpush1.bf16.msra.mxu0 %v1557
    %1586 = vmatprep.subr.bf16.mxu0 0
    %1587 = vmatpush1.bf16.msra.mxu0 %v1556
    %1588 = vmatprep.subr.bf16.mxu0 0
    %1589 = vmatpush2.bf16.msra.mxu0 0
    %1590 = vmatprep.subr.bf16.mxu0 0
    %1591 = vmatpush2.bf16.msra.mxu0 0
    %1592 = vmatprep.subr.bf16.mxu0 0
    %1593 = vmatpush2.bf16.msra.mxu0 0
    %1594 = vmatprep.subr.bf16.mxu0 0
    %1595 = vmatpush2.bf16.msra.mxu0 0
    %1596 = vmatprep.subr.bf16.mxu0 0
    %1597 = vmatpush2.bf16.msra.mxu0 0
    %1598 = vmatprep.subr.bf16.mxu0 0
    %1599 = vmatpush2.bf16.msra.mxu0 0
    %1600 = vmatprep.subr.bf16.mxu0 0
    %1601 = vmatpush2.bf16.msra.mxu0 0
    %1602 = vmatprep.subr.bf16.mxu0 0
    %1603 = vmatpush2.bf16.msra.mxu0 0
    %1604 = vmatprep.mubr.bf16.mxu0 0
    %1605 = vmatmul.mubr.bf16.gmra.mxu0 %v1215
    %v1606 = vpop.f32.mrf.mxu0
    %v1607 = vadd.f32 %v1518, %v1606
    %v1608 = vpop.f32.mrf.mxu0
    %v1609 = vpop.f32.mrf.mxu0
    %v1610 = vadd.f32 %v1521, %v1609
    %v1611 = vpop.f32.mrf.mxu0
    %1612 = vdwg.mxu0
    %v1613 = vld [vmem:[#allocation8 + $0x80] sm:$0xf]
    %v1614 = vld [vmem:[#allocation8 + $0x84] sm:$0xf]
    %v1615 = vld [vmem:[#allocation8 + $0x88] sm:$0xf]
    %v1616 = vld [vmem:[#allocation8 + $0x8c] sm:$0xf]
    %v1617 = vld [vmem:[#allocation8 + $0x90] sm:$0xf]
    %v1618 = vld [vmem:[#allocation8 + $0x94] sm:$0xf]
    %v1619 = vld [vmem:[#allocation8 + $0x98] sm:$0xf]
    %v1620 = vld [vmem:[#allocation8 + $0x9c] sm:$0xf]
    %v1621 = vld [vmem:[#allocation8 + $0xa0] sm:$0xf]
    %v1622 = vld [vmem:[#allocation8 + $0xa4] sm:$0xf]
    %v1623 = vld [vmem:[#allocation8 + $0xa8] sm:$0xf]
    %v1624 = vld [vmem:[#allocation8 + $0xac] sm:$0xf]
    %v1625 = vld [vmem:[#allocation8 + $0xb0] sm:$0xf]
    %v1626 = vld [vmem:[#allocation8 + $0xb4] sm:$0xf]
    %v1627 = vld [vmem:[#allocation8 + $0xb8] sm:$0xf]
    %v1628 = vld [vmem:[#allocation8 + $0xbc] sm:$0xf]
    %v1629 = vpack.c.bf16 %v815, %v815
    %v1630 = vpack.c.bf16 %v901, %v901
    %v1631 = vpack.c.bf16 %v987, %v987
    %1632 = vmatprep.subr.bf16.mxu0 0
    %1633 = vmatpush1.bf16.xpose.msra.mxu0 0
    %1634 = vmatprep.subr.bf16.mxu0 0
    %1635 = vmatpush1.bf16.xpose.msra.mxu0 0
    %1636 = vmatprep.subr.bf16.mxu0 0
    %1637 = vmatpush1.bf16.xpose.msra.mxu0 0
    %1638 = vmatprep.subr.bf16.mxu0 0
    %1639 = vmatpush1.bf16.xpose.msra.mxu0 0
    %1640 = vmatprep.subr.bf16.mxu0 0
    %1641 = vmatpush1.bf16.xpose.msra.mxu0 0
    %1642 = vmatprep.subr.bf16.mxu0 0
    %1643 = vmatpush1.bf16.xpose.msra.mxu0 0
    %1644 = vmatprep.subr.bf16.mxu0 0
    %1645 = vmatpush1.bf16.xpose.msra.mxu0 0
    %1646 = vmatprep.subr.bf16.mxu0 0
    %1647 = vmatpush1.bf16.xpose.msra.mxu0 %v1630
    %1648 = vmatprep.subr.bf16.mxu0 0
    %1649 = vmatpush2.bf16.xpose.msra.mxu0 0
    %1650 = vmatprep.subr.bf16.mxu0 0
    %1651 = vmatpush2.bf16.xpose.msra.mxu0 0
    %1652 = vmatprep.subr.bf16.mxu0 0
    %1653 = vmatpush2.bf16.xpose.msra.mxu0 0
    %1654 = vmatprep.subr.bf16.mxu0 0
    %1655 = vmatpush2.bf16.xpose.msra.mxu0 0
    %1656 = vmatprep.subr.bf16.mxu0 0
    %1657 = vmatpush2.bf16.xpose.msra.mxu0 0
    %1658 = vmatprep.subr.bf16.mxu0 0
    %1659 = vmatpush2.bf16.xpose.msra.mxu0 0
    %1660 = vmatprep.subr.bf16.mxu0 0
    %1661 = vmatpush2.bf16.xpose.msra.mxu0 0
    %1662 = vmatprep.subr.bf16.mxu0 0
    %1663 = vmatpush2.bf16.xpose.msra.mxu0 0
    %1664 = vmatprep.mubr.bf16.mxu0 0
    %1665 = vmatmul.mubr.bf16.gmra.mxu0 %v1629
    %v1666 = vpop.f32.mrf.mxu0
    %v1667 = vadd.f32 0.0, %v1666
    %v1668 = vpop.f32.mrf.mxu0
    %v1669 = vpop.f32.mrf.mxu0
    %v1670 = vpop.f32.mrf.mxu0
    %1671 = vdwg.mxu0
    %v1672 = vsel %vm1054, %v1667, -inf
    %1673 = vmax.xlane.f32.xlu0 %v1672
    %v1674 = vpop.xlane.xlu0 %1673
    %v1675 = vsub.f32 %v1667, %v1674
    %v1676 = vmul.f32 %v1675, 1.442695
    %v1677 = vpow.pop %v1676
    %v1678 = vsel %vm1054, %v1677, 0.0
    %1679 = vadd.xlane.f32.xlu0 %v1678
    %v1680 = vpop.xlane.xlu0 %1679
    %v1681 = vrcp.pop %v1680
    %v1682 = vmul.f32 %v1677, %v1681
    %v1683 = vpack.c.bf16 %v1682, %v1682
    %v1685 = vsel %vm1054, %v1683, 0
    %v1688 = vsel %vm1070, %v1631, 0
    %1690 = vmatprep.subr.bf16.mxu0 0
    %1691 = vmatpush1.bf16.msra.mxu0 0
    %1692 = vmatprep.subr.bf16.mxu0 0
    %1693 = vmatpush1.bf16.msra.mxu0 0
    %1694 = vmatprep.subr.bf16.mxu0 0
    %1695 = vmatpush1.bf16.msra.mxu0 0
    %1696 = vmatprep.subr.bf16.mxu0 0
    %1697 = vmatpush1.bf16.msra.mxu0 0
    %1698 = vmatprep.subr.bf16.mxu0 0
    %1699 = vmatpush1.bf16.msra.mxu0 0
    %1700 = vmatprep.subr.bf16.mxu0 0
    %1701 = vmatpush1.bf16.msra.mxu0 0
    %1702 = vmatprep.subr.bf16.mxu0 0
    %1703 = vmatpush1.bf16.msra.mxu0 0
    %1704 = vmatprep.subr.bf16.mxu0 0
    %1705 = vmatpush1.bf16.msra.mxu0 %v1688
    %1706 = vmatprep.subr.bf16.mxu0 0
    %1707 = vmatpush2.bf16.msra.mxu0 0
    %1708 = vmatprep.subr.bf16.mxu0 0
    %1709 = vmatpush2.bf16.msra.mxu0 0
    %1710 = vmatprep.subr.bf16.mxu0 0
    %1711 = vmatpush2.bf16.msra.mxu0 0
    %1712 = vmatprep.subr.bf16.mxu0 0
    %1713 = vmatpush2.bf16.msra.mxu0 0
    %1714 = vmatprep.subr.bf16.mxu0 0
    %1715 = vmatpush2.bf16.msra.mxu0 0
    %1716 = vmatprep.subr.bf16.mxu0 0
    %1717 = vmatpush2.bf16.msra.mxu0 0
    %1718 = vmatprep.subr.bf16.mxu0 0
    %1719 = vmatpush2.bf16.msra.mxu0 0
    %1720 = vmatprep.subr.bf16.mxu0 0
    %1721 = vmatpush2.bf16.msra.mxu0 0
    %1722 = vmatprep.mubr.bf16.mxu0 0
    %1723 = vmatmul.mubr.bf16.gmra.mxu0 %v1685
    %v1724 = vpop.f32.mrf.mxu0
    %v1725 = vadd.f32 0.0, %v1724
    %v1726 = vpop.f32.mrf.mxu0
    %v1727 = vpop.f32.mrf.mxu0
    %v1728 = vpop.f32.mrf.mxu0
    %1729 = vdwg.mxu0
    %v1730 = vpack.c.bf16 %v819, %v819
    %v1731 = vpack.c.bf16 %v905, %v905
    %v1732 = vpack.c.bf16 %v991, %v991
    %1733 = vmatprep.subr.bf16.mxu0 0
    %1734 = vmatpush1.bf16.xpose.msra.mxu0 0
    %1735 = vmatprep.subr.bf16.mxu0 0
    %1736 = vmatpush1.bf16.xpose.msra.mxu0 0
    %1737 = vmatprep.subr.bf16.mxu0 0
    %1738 = vmatpush1.bf16.xpose.msra.mxu0 0
    %1739 = vmatprep.subr.bf16.mxu0 0
    %1740 = vmatpush1.bf16.xpose.msra.mxu0 0
    %1741 = vmatprep.subr.bf16.mxu0 0
    %1742 = vmatpush1.bf16.xpose.msra.mxu0 0
    %1743 = vmatprep.subr.bf16.mxu0 0
    %1744 = vmatpush1.bf16.xpose.msra.mxu0 0
    %1745 = vmatprep.subr.bf16.mxu0 0
    %1746 = vmatpush1.bf16.xpose.msra.mxu0 0
    %1747 = vmatprep.subr.bf16.mxu0 0
    %1748 = vmatpush1.bf16.xpose.msra.mxu0 %v1731
    %1749 = vmatprep.subr.bf16.mxu0 0
    %1750 = vmatpush2.bf16.xpose.msra.mxu0 0
    %1751 = vmatprep.subr.bf16.mxu0 0
    %1752 = vmatpush2.bf16.xpose.msra.mxu0 0
    %1753 = vmatprep.subr.bf16.mxu0 0
    %1754 = vmatpush2.bf16.xpose.msra.mxu0 0
    %1755 = vmatprep.subr.bf16.mxu0 0
    %1756 = vmatpush2.bf16.xpose.msra.mxu0 0
    %1757 = vmatprep.subr.bf16.mxu0 0
    %1758 = vmatpush2.bf16.xpose.msra.mxu0 0
    %1759 = vmatprep.subr.bf16.mxu0 0
    %1760 = vmatpush2.bf16.xpose.msra.mxu0 0
    %1761 = vmatprep.subr.bf16.mxu0 0
    %1762 = vmatpush2.bf16.xpose.msra.mxu0 0
    %1763 = vmatprep.subr.bf16.mxu0 0
    %1764 = vmatpush2.bf16.xpose.msra.mxu0 0
    %1765 = vmatprep.mubr.bf16.mxu0 0
    %1766 = vmatmul.mubr.bf16.gmra.mxu0 %v1730
    %v1767 = vpop.f32.mrf.mxu0
    %v1768 = vadd.f32 0.0, %v1767
    %v1769 = vpop.f32.mrf.mxu0
    %v1770 = vpop.f32.mrf.mxu0
    %v1771 = vpop.f32.mrf.mxu0
    %1772 = vdwg.mxu0
    %v1773 = vsel %vm1054, %v1768, -inf
    %1774 = vmax.xlane.f32.xlu0 %v1773
    %v1775 = vpop.xlane.xlu0 %1774
    %v1776 = vsub.f32 %v1768, %v1775
    %v1777 = vmul.f32 %v1776, 1.442695
    %v1778 = vpow.pop %v1777
    %v1779 = vsel %vm1054, %v1778, 0.0
    %1780 = vadd.xlane.f32.xlu0 %v1779
    %v1781 = vpop.xlane.xlu0 %1780
    %v1782 = vrcp.pop %v1781
    %v1783 = vmul.f32 %v1778, %v1782
    %v1784 = vpack.c.bf16 %v1783, %v1783
    %v1786 = vsel %vm1054, %v1784, 0
    %v1789 = vsel %vm1070, %v1732, 0
    %1791 = vmatprep.subr.bf16.mxu0 0
    %1792 = vmatpush1.bf16.msra.mxu0 0
    %1793 = vmatprep.subr.bf16.mxu0 0
    %1794 = vmatpush1.bf16.msra.mxu0 0
    %1795 = vmatprep.subr.bf16.mxu0 0
    %1796 = vmatpush1.bf16.msra.mxu0 0
    %1797 = vmatprep.subr.bf16.mxu0 0
    %1798 = vmatpush1.bf16.msra.mxu0 0
    %1799 = vmatprep.subr.bf16.mxu0 0
    %1800 = vmatpush1.bf16.msra.mxu0 0
    %1801 = vmatprep.subr.bf16.mxu0 0
    %1802 = vmatpush1.bf16.msra.mxu0 0
    %1803 = vmatprep.subr.bf16.mxu0 0
    %1804 = vmatpush1.bf16.msra.mxu0 0
    %1805 = vmatprep.subr.bf16.mxu0 0
    %1806 = vmatpush1.bf16.msra.mxu0 %v1789
    %1807 = vmatprep.subr.bf16.mxu0 0
    %1808 = vmatpush2.bf16.msra.mxu0 0
    %1809 = vmatprep.subr.bf16.mxu0 0
    %1810 = vmatpush2.bf16.msra.mxu0 0
    %1811 = vmatprep.subr.bf16.mxu0 0
    %1812 = vmatpush2.bf16.msra.mxu0 0
    %1813 = vmatprep.subr.bf16.mxu0 0
    %1814 = vmatpush2.bf16.msra.mxu0 0
    %1815 = vmatprep.subr.bf16.mxu0 0
    %1816 = vmatpush2.bf16.msra.mxu0 0
    %1817 = vmatprep.subr.bf16.mxu0 0
    %1818 = vmatpush2.bf16.msra.mxu0 0
    %1819 = vmatprep.subr.bf16.mxu0 0
    %1820 = vmatpush2.bf16.msra.mxu0 0
    %1821 = vmatprep.subr.bf16.mxu0 0
    %1822 = vmatpush2.bf16.msra.mxu0 0
    %1823 = vmatprep.mubr.bf16.mxu0 0
    %1824 = vmatmul.mubr.bf16.gmra.mxu0 %v1786
    %v1825 = vpop.f32.mrf.mxu0
    %v1826 = vadd.f32 0.0, %v1825
    %v1827 = vpop.f32.mrf.mxu0
    %v1828 = vpop.f32.mrf.mxu0
    %v1829 = vpop.f32.mrf.mxu0
    %1830 = vdwg.mxu0
    %v1831 = vpack.c.bf16 %v1826, %v1725
    %v1848 = vunpack.c.l.b16 %v1613
    %v1849 = vunpack.c.l.b16 %v1614
    %v1850 = vunpack.c.l.b16 %v1615
    %v1851 = vunpack.c.l.b16 %v1616
    %v1852 = vunpack.c.l.b16 %v1617
    %v1853 = vunpack.c.l.b16 %v1618
    %v1854 = vunpack.c.l.b16 %v1619
    %v1855 = vunpack.c.l.b16 %v1620
    %v1856 = vunpack.c.l.b16 %v1621
    %v1857 = vunpack.c.l.b16 %v1622
    %v1858 = vunpack.c.l.b16 %v1623
    %v1859 = vunpack.c.l.b16 %v1624
    %v1860 = vunpack.c.l.b16 %v1625
    %v1861 = vunpack.c.l.b16 %v1626
    %v1862 = vunpack.c.l.b16 %v1627
    %v1863 = vunpack.c.l.b16 %v1628
    %v1864 = vpack.c.b16 %v1849, %v1848
    %v1865 = vpack.c.b16 %v1851, %v1850
    %v1866 = vpack.c.b16 %v1853, %v1852
    %v1867 = vpack.c.b16 %v1855, %v1854
    %v1868 = vpack.c.b16 %v1857, %v1856
    %v1869 = vpack.c.b16 %v1859, %v1858
    %v1870 = vpack.c.b16 %v1861, %v1860
    %v1871 = vpack.c.b16 %v1863, %v1862
    %1880 = vmatprep.subr.bf16.mxu0 0
    %1881 = vmatpush1.bf16.msra.mxu0 %v1871
    %1882 = vmatprep.subr.bf16.mxu0 0
    %1883 = vmatpush1.bf16.msra.mxu0 %v1870
    %1884 = vmatprep.subr.bf16.mxu0 0
    %1885 = vmatpush1.bf16.msra.mxu0 %v1869
    %1886 = vmatprep.subr.bf16.mxu0 0
    %1887 = vmatpush1.bf16.msra.mxu0 %v1868
    %1888 = vmatprep.subr.bf16.mxu0 0
    %1889 = vmatpush1.bf16.msra.mxu0 %v1867
    %1890 = vmatprep.subr.bf16.mxu0 0
    %1891 = vmatpush1.bf16.msra.mxu0 %v1866
    %1892 = vmatprep.subr.bf16.mxu0 0
    %1893 = vmatpush1.bf16.msra.mxu0 %v1865
    %1894 = vmatprep.subr.bf16.mxu0 0
    %1895 = vmatpush1.bf16.msra.mxu0 %v1864
    %1896 = vmatprep.subr.bf16.mxu0 0
    %1897 = vmatpush2.bf16.msra.mxu0 0
    %1898 = vmatprep.subr.bf16.mxu0 0
    %1899 = vmatpush2.bf16.msra.mxu0 0
    %1900 = vmatprep.subr.bf16.mxu0 0
    %1901 = vmatpush2.bf16.msra.mxu0 0
    %1902 = vmatprep.subr.bf16.mxu0 0
    %1903 = vmatpush2.bf16.msra.mxu0 0
    %1904 = vmatprep.subr.bf16.mxu0 0
    %1905 = vmatpush2.bf16.msra.mxu0 0
    %1906 = vmatprep.subr.bf16.mxu0 0
    %1907 = vmatpush2.bf16.msra.mxu0 0
    %1908 = vmatprep.subr.bf16.mxu0 0
    %1909 = vmatpush2.bf16.msra.mxu0 0
    %1910 = vmatprep.subr.bf16.mxu0 0
    %1911 = vmatpush2.bf16.msra.mxu0 0
    %1912 = vmatprep.mubr.bf16.mxu0 0
    %1913 = vmatmul.mubr.bf16.gmra.mxu0 %v1831
    %v1914 = vpop.f32.mrf.mxu0
    %v1915 = vadd.f32 0.0, %v1914
    %v1916 = vpop.f32.mrf.mxu0
    %v1917 = vpop.f32.mrf.mxu0
    %v1918 = vadd.f32 0.0, %v1917
    %v1919 = vpop.f32.mrf.mxu0
    %1920 = vdwg.mxu0
    %v1921 = vadd.f32 %v1607, %v1915
    %v1922 = vadd.f32 %v1610, %v1918
    %v1923 = vld [vmem:[#allocation8 + $0xc0] sm:$0xf]
    %v1924 = vld [vmem:[#allocation8 + $0xc4] sm:$0xf]
    %v1925 = vld [vmem:[#allocation8 + $0xc8] sm:$0xf]
    %v1926 = vld [vmem:[#allocation8 + $0xcc] sm:$0xf]
    %v1927 = vld [vmem:[#allocation8 + $0xd0] sm:$0xf]
    %v1928 = vld [vmem:[#allocation8 + $0xd4] sm:$0xf]
    %v1929 = vld [vmem:[#allocation8 + $0xd8] sm:$0xf]
    %v1930 = vld [vmem:[#allocation8 + $0xdc] sm:$0xf]
    %v1931 = vld [vmem:[#allocation8 + $0xe0] sm:$0xf]
    %v1932 = vld [vmem:[#allocation8 + $0xe4] sm:$0xf]
    %v1933 = vld [vmem:[#allocation8 + $0xe8] sm:$0xf]
    %v1934 = vld [vmem:[#allocation8 + $0xec] sm:$0xf]
    %v1935 = vld [vmem:[#allocation8 + $0xf0] sm:$0xf]
    %v1936 = vld [vmem:[#allocation8 + $0xf4] sm:$0xf]
    %v1937 = vld [vmem:[#allocation8 + $0xf8] sm:$0xf]
    %v1938 = vld [vmem:[#allocation8 + $0xfc] sm:$0xf]
    %v1939 = vpack.c.bf16 %v817, %v817
    %v1940 = vpack.c.bf16 %v903, %v903
    %v1941 = vpack.c.bf16 %v989, %v989
    %1942 = vmatprep.subr.bf16.mxu0 0
    %1943 = vmatpush1.bf16.xpose.msra.mxu0 0
    %1944 = vmatprep.subr.bf16.mxu0 0
    %1945 = vmatpush1.bf16.xpose.msra.mxu0 0
    %1946 = vmatprep.subr.bf16.mxu0 0
    %1947 = vmatpush1.bf16.xpose.msra.mxu0 0
    %1948 = vmatprep.subr.bf16.mxu0 0
    %1949 = vmatpush1.bf16.xpose.msra.mxu0 0
    %1950 = vmatprep.subr.bf16.mxu0 0
    %1951 = vmatpush1.bf16.xpose.msra.mxu0 0
    %1952 = vmatprep.subr.bf16.mxu0 0
    %1953 = vmatpush1.bf16.xpose.msra.mxu0 0
    %1954 = vmatprep.subr.bf16.mxu0 0
    %1955 = vmatpush1.bf16.xpose.msra.mxu0 0
    %1956 = vmatprep.subr.bf16.mxu0 0
    %1957 = vmatpush1.bf16.xpose.msra.mxu0 %v1940
    %1958 = vmatprep.subr.bf16.mxu0 0
    %1959 = vmatpush2.bf16.xpose.msra.mxu0 0
    %1960 = vmatprep.subr.bf16.mxu0 0
    %1961 = vmatpush2.bf16.xpose.msra.mxu0 0
    %1962 = vmatprep.subr.bf16.mxu0 0
    %1963 = vmatpush2.bf16.xpose.msra.mxu0 0
    %1964 = vmatprep.subr.bf16.mxu0 0
    %1965 = vmatpush2.bf16.xpose.msra.mxu0 0
    %1966 = vmatprep.subr.bf16.mxu0 0
    %1967 = vmatpush2.bf16.xpose.msra.mxu0 0
    %1968 = vmatprep.subr.bf16.mxu0 0
    %1969 = vmatpush2.bf16.xpose.msra.mxu0 0
    %1970 = vmatprep.subr.bf16.mxu0 0
    %1971 = vmatpush2.bf16.xpose.msra.mxu0 0
    %1972 = vmatprep.subr.bf16.mxu0 0
    %1973 = vmatpush2.bf16.xpose.msra.mxu0 0
    %1974 = vmatprep.mubr.bf16.mxu0 0
    %1975 = vmatmul.mubr.bf16.gmra.mxu0 %v1939
    %v1976 = vpop.f32.mrf.mxu0
    %v1977 = vadd.f32 0.0, %v1976
    %v1978 = vpop.f32.mrf.mxu0
    %v1979 = vpop.f32.mrf.mxu0
    %v1980 = vpop.f32.mrf.mxu0
    %1981 = vdwg.mxu0
    %v1982 = vsel %vm1054, %v1977, -inf
    %1983 = vmax.xlane.f32.xlu0 %v1982
    %v1984 = vpop.xlane.xlu0 %1983
    %v1985 = vsub.f32 %v1977, %v1984
    %v1986 = vmul.f32 %v1985, 1.442695
    %v1987 = vpow.pop %v1986
    %v1988 = vsel %vm1054, %v1987, 0.0
    %1989 = vadd.xlane.f32.xlu0 %v1988
    %v1990 = vpop.xlane.xlu0 %1989
    %v1991 = vrcp.pop %v1990
    %v1992 = vmul.f32 %v1987, %v1991
    %v1993 = vpack.c.bf16 %v1992, %v1992
    %v1995 = vsel %vm1054, %v1993, 0
    %v1998 = vsel %vm1070, %v1941, 0
    %2000 = vmatprep.subr.bf16.mxu0 0
    %2001 = vmatpush1.bf16.msra.mxu0 0
    %2002 = vmatprep.subr.bf16.mxu0 0
    %2003 = vmatpush1.bf16.msra.mxu0 0
    %2004 = vmatprep.subr.bf16.mxu0 0
    %2005 = vmatpush1.bf16.msra.mxu0 0
    %2006 = vmatprep.subr.bf16.mxu0 0
    %2007 = vmatpush1.bf16.msra.mxu0 0
    %2008 = vmatprep.subr.bf16.mxu0 0
    %2009 = vmatpush1.bf16.msra.mxu0 0
    %2010 = vmatprep.subr.bf16.mxu0 0
    %2011 = vmatpush1.bf16.msra.mxu0 0
    %2012 = vmatprep.subr.bf16.mxu0 0
    %2013 = vmatpush1.bf16.msra.mxu0 0
    %2014 = vmatprep.subr.bf16.mxu0 0
    %2015 = vmatpush1.bf16.msra.mxu0 %v1998
    %2016 = vmatprep.subr.bf16.mxu0 0
    %2017 = vmatpush2.bf16.msra.mxu0 0
    %2018 = vmatprep.subr.bf16.mxu0 0
    %2019 = vmatpush2.bf16.msra.mxu0 0
    %2020 = vmatprep.subr.bf16.mxu0 0
    %2021 = vmatpush2.bf16.msra.mxu0 0
    %2022 = vmatprep.subr.bf16.mxu0 0
    %2023 = vmatpush2.bf16.msra.mxu0 0
    %2024 = vmatprep.subr.bf16.mxu0 0
    %2025 = vmatpush2.bf16.msra.mxu0 0
    %2026 = vmatprep.subr.bf16.mxu0 0
    %2027 = vmatpush2.bf16.msra.mxu0 0
    %2028 = vmatprep.subr.bf16.mxu0 0
    %2029 = vmatpush2.bf16.msra.mxu0 0
    %2030 = vmatprep.subr.bf16.mxu0 0
    %2031 = vmatpush2.bf16.msra.mxu0 0
    %2032 = vmatprep.mubr.bf16.mxu0 0
    %2033 = vmatmul.mubr.bf16.gmra.mxu0 %v1995
    %v2034 = vpop.f32.mrf.mxu0
    %v2035 = vadd.f32 0.0, %v2034
    %v2036 = vpop.f32.mrf.mxu0
    %v2037 = vpop.f32.mrf.mxu0
    %v2038 = vpop.f32.mrf.mxu0
    %2039 = vdwg.mxu0
    %v2040 = vpack.c.bf16 %v821, %v821
    %v2041 = vpack.c.bf16 %v907, %v907
    %v2042 = vpack.c.bf16 %v993, %v993
    %2043 = vmatprep.subr.bf16.mxu0 0
    %2044 = vmatpush1.bf16.xpose.msra.mxu0 0
    %2045 = vmatprep.subr.bf16.mxu0 0
    %2046 = vmatpush1.bf16.xpose.msra.mxu0 0
    %2047 = vmatprep.subr.bf16.mxu0 0
    %2048 = vmatpush1.bf16.xpose.msra.mxu0 0
    %2049 = vmatprep.subr.bf16.mxu0 0
    %2050 = vmatpush1.bf16.xpose.msra.mxu0 0
    %2051 = vmatprep.subr.bf16.mxu0 0
    %2052 = vmatpush1.bf16.xpose.msra.mxu0 0
    %2053 = vmatprep.subr.bf16.mxu0 0
    %2054 = vmatpush1.bf16.xpose.msra.mxu0 0
    %2055 = vmatprep.subr.bf16.mxu0 0
    %2056 = vmatpush1.bf16.xpose.msra.mxu0 0
    %2057 = vmatprep.subr.bf16.mxu0 0
    %2058 = vmatpush1.bf16.xpose.msra.mxu0 %v2041
    %2059 = vmatprep.subr.bf16.mxu0 0
    %2060 = vmatpush2.bf16.xpose.msra.mxu0 0
    %2061 = vmatprep.subr.bf16.mxu0 0
    %2062 = vmatpush2.bf16.xpose.msra.mxu0 0
    %2063 = vmatprep.subr.bf16.mxu0 0
    %2064 = vmatpush2.bf16.xpose.msra.mxu0 0
    %2065 = vmatprep.subr.bf16.mxu0 0
    %2066 = vmatpush2.bf16.xpose.msra.mxu0 0
    %2067 = vmatprep.subr.bf16.mxu0 0
    %2068 = vmatpush2.bf16.xpose.msra.mxu0 0
    %2069 = vmatprep.subr.bf16.mxu0 0
    %2070 = vmatpush2.bf16.xpose.msra.mxu0 0
    %2071 = vmatprep.subr.bf16.mxu0 0
    %2072 = vmatpush2.bf16.xpose.msra.mxu0 0
    %2073 = vmatprep.subr.bf16.mxu0 0
    %2074 = vmatpush2.bf16.xpose.msra.mxu0 0
    %2075 = vmatprep.mubr.bf16.mxu0 0
    %2076 = vmatmul.mubr.bf16.gmra.mxu0 %v2040
    %v2077 = vpop.f32.mrf.mxu0
    %v2078 = vadd.f32 0.0, %v2077
    %v2079 = vpop.f32.mrf.mxu0
    %v2080 = vpop.f32.mrf.mxu0
    %v2081 = vpop.f32.mrf.mxu0
    %2082 = vdwg.mxu0
    %v2083 = vsel %vm1054, %v2078, -inf
    %2084 = vmax.xlane.f32.xlu0 %v2083
    %v2085 = vpop.xlane.xlu0 %2084
    %v2086 = vsub.f32 %v2078, %v2085
    %v2087 = vmul.f32 %v2086, 1.442695
    %v2088 = vpow.pop %v2087
    %v2089 = vsel %vm1054, %v2088, 0.0
    %2090 = vadd.xlane.f32.xlu0 %v2089
    %v2091 = vpop.xlane.xlu0 %2090
    %v2092 = vrcp.pop %v2091
    %v2093 = vmul.f32 %v2088, %v2092
    %v2094 = vpack.c.bf16 %v2093, %v2093
    %v2096 = vsel %vm1054, %v2094, 0
    %v2099 = vsel %vm1070, %v2042, 0
    %2101 = vmatprep.subr.bf16.mxu0 0
    %2102 = vmatpush1.bf16.msra.mxu0 0
    %2103 = vmatprep.subr.bf16.mxu0 0
    %2104 = vmatpush1.bf16.msra.mxu0 0
    %2105 = vmatprep.subr.bf16.mxu0 0
    %2106 = vmatpush1.bf16.msra.mxu0 0
    %2107 = vmatprep.subr.bf16.mxu0 0
    %2108 = vmatpush1.bf16.msra.mxu0 0
    %2109 = vmatprep.subr.bf16.mxu0 0
    %2110 = vmatpush1.bf16.msra.mxu0 0
    %2111 = vmatprep.subr.bf16.mxu0 0
    %2112 = vmatpush1.bf16.msra.mxu0 0
    %2113 = vmatprep.subr.bf16.mxu0 0
    %2114 = vmatpush1.bf16.msra.mxu0 0
    %2115 = vmatprep.subr.bf16.mxu0 0
    %2116 = vmatpush1.bf16.msra.mxu0 %v2099
    %2117 = vmatprep.subr.bf16.mxu0 0
    %2118 = vmatpush2.bf16.msra.mxu0 0
    %2119 = vmatprep.subr.bf16.mxu0 0
    %2120 = vmatpush2.bf16.msra.mxu0 0
    %2121 = vmatprep.subr.bf16.mxu0 0
    %2122 = vmatpush2.bf16.msra.mxu0 0
    %2123 = vmatprep.subr.bf16.mxu0 0
    %2124 = vmatpush2.bf16.msra.mxu0 0
    %2125 = vmatprep.subr.bf16.mxu0 0
    %2126 = vmatpush2.bf16.msra.mxu0 0
    %2127 = vmatprep.subr.bf16.mxu0 0
    %2128 = vmatpush2.bf16.msra.mxu0 0
    %2129 = vmatprep.subr.bf16.mxu0 0
    %2130 = vmatpush2.bf16.msra.mxu0 0
    %2131 = vmatprep.subr.bf16.mxu0 0
    %2132 = vmatpush2.bf16.msra.mxu0 0
    %2133 = vmatprep.mubr.bf16.mxu0 0
    %2134 = vmatmul.mubr.bf16.gmra.mxu0 %v2096
    %v2135 = vpop.f32.mrf.mxu0
    %v2136 = vadd.f32 0.0, %v2135
    %v2137 = vpop.f32.mrf.mxu0
    %v2138 = vpop.f32.mrf.mxu0
    %v2139 = vpop.f32.mrf.mxu0
    %2140 = vdwg.mxu0
    %v2141 = vpack.c.bf16 %v2136, %v2035
    %v2158 = vunpack.c.l.b16 %v1923
    %v2159 = vunpack.c.l.b16 %v1924
    %v2160 = vunpack.c.l.b16 %v1925
    %v2161 = vunpack.c.l.b16 %v1926
    %v2162 = vunpack.c.l.b16 %v1927
    %v2163 = vunpack.c.l.b16 %v1928
    %v2164 = vunpack.c.l.b16 %v1929
    %v2165 = vunpack.c.l.b16 %v1930
    %v2166 = vunpack.c.l.b16 %v1931
    %v2167 = vunpack.c.l.b16 %v1932
    %v2168 = vunpack.c.l.b16 %v1933
    %v2169 = vunpack.c.l.b16 %v1934
    %v2170 = vunpack.c.l.b16 %v1935
    %v2171 = vunpack.c.l.b16 %v1936
    %v2172 = vunpack.c.l.b16 %v1937
    %v2173 = vunpack.c.l.b16 %v1938
    %v2174 = vpack.c.b16 %v2159, %v2158
    %v2175 = vpack.c.b16 %v2161, %v2160
    %v2176 = vpack.c.b16 %v2163, %v2162
    %v2177 = vpack.c.b16 %v2165, %v2164
    %v2178 = vpack.c.b16 %v2167, %v2166
    %v2179 = vpack.c.b16 %v2169, %v2168
    %v2180 = vpack.c.b16 %v2171, %v2170
    %v2181 = vpack.c.b16 %v2173, %v2172
    %2190 = vmatprep.subr.bf16.mxu0 0
    %2191 = vmatpush1.bf16.msra.mxu0 %v2181
    %2192 = vmatprep.subr.bf16.mxu0 0
    %2193 = vmatpush1.bf16.msra.mxu0 %v2180
    %2194 = vmatprep.subr.bf16.mxu0 0
    %2195 = vmatpush1.bf16.msra.mxu0 %v2179
    %2196 = vmatprep.subr.bf16.mxu0 0
    %2197 = vmatpush1.bf16.msra.mxu0 %v2178
    %2198 = vmatprep.subr.bf16.mxu0 0
    %2199 = vmatpush1.bf16.msra.mxu0 %v2177
    %2200 = vmatprep.subr.bf16.mxu0 0
    %2201 = vmatpush1.bf16.msra.mxu0 %v2176
    %2202 = vmatprep.subr.bf16.mxu0 0
    %2203 = vmatpush1.bf16.msra.mxu0 %v2175
    %2204 = vmatprep.subr.bf16.mxu0 0
    %2205 = vmatpush1.bf16.msra.mxu0 %v2174
    %2206 = vmatprep.subr.bf16.mxu0 0
    %2207 = vmatpush2.bf16.msra.mxu0 0
    %2208 = vmatprep.subr.bf16.mxu0 0
    %2209 = vmatpush2.bf16.msra.mxu0 0
    %2210 = vmatprep.subr.bf16.mxu0 0
    %2211 = vmatpush2.bf16.msra.mxu0 0
    %2212 = vmatprep.subr.bf16.mxu0 0
    %2213 = vmatpush2.bf16.msra.mxu0 0
    %2214 = vmatprep.subr.bf16.mxu0 0
    %2215 = vmatpush2.bf16.msra.mxu0 0
    %2216 = vmatprep.subr.bf16.mxu0 0
    %2217 = vmatpush2.bf16.msra.mxu0 0
    %2218 = vmatprep.subr.bf16.mxu0 0
    %2219 = vmatpush2.bf16.msra.mxu0 0
    %2220 = vmatprep.subr.bf16.mxu0 0
    %2221 = vmatpush2.bf16.msra.mxu0 0
    %2222 = vmatprep.mubr.bf16.mxu0 0
    %2223 = vmatmul.mubr.bf16.gmra.mxu0 %v2141
    %v2224 = vpop.f32.mrf.mxu0
    %v2225 = vadd.f32 0.0, %v2224
    %v2226 = vpop.f32.mrf.mxu0
    %v2227 = vpop.f32.mrf.mxu0
    %v2228 = vadd.f32 0.0, %v2227
    %v2229 = vpop.f32.mrf.mxu0
    %2230 = vdwg.mxu0
    %v2231 = vadd.f32 %v1921, %v2225
    %v2232 = vadd.f32 %v1922, %v2228
    %v2233 = vld [vmem:[%s5] sm:$0x1]
    %v2235 = vlaneseq
    %v2236 = vshrl.u32 %v2235, 7
    %v2237 = vsub.s32 0, %v2236
    %v2238 = vrot.slane %v2233, %v2237
    %v2240 = vadd.f32 %v2231, %v2238
    %v2241 = vadd.f32 %v2232, %v2238
    %v2242 = vadd.f32 %v2240, %v117
    %v2243 = vadd.f32 %v2241, %v118
    %v2244 = vpack.c.bf16 %v2243, %v2242
    %v2245 = vld [vmem:[#allocation10] sm:$0xff]
    %v2246 = vld [vmem:[#allocation10 + $0x8] sm:$0xff]
    %v2247 = vld [vmem:[#allocation10 + $0x10] sm:$0xff]
    %v2248 = vld [vmem:[#allocation10 + $0x18] sm:$0xff]
    %v2249 = vld [vmem:[#allocation10 + $0x20] sm:$0xff]
    %v2250 = vld [vmem:[#allocation10 + $0x28] sm:$0xff]
    %v2251 = vld [vmem:[#allocation10 + $0x30] sm:$0xff]
    %v2252 = vld [vmem:[#allocation10 + $0x38] sm:$0xff]
    %v2253 = vld [vmem:[#allocation10 + $0x40] sm:$0xff]
    %v2254 = vld [vmem:[#allocation10 + $0x48] sm:$0xff]
    %v2255 = vld [vmem:[#allocation10 + $0x50] sm:$0xff]
    %v2256 = vld [vmem:[#allocation10 + $0x58] sm:$0xff]
    %v2257 = vld [vmem:[#allocation10 + $0x60] sm:$0xff]
    %v2258 = vld [vmem:[#allocation10 + $0x68] sm:$0xff]
    %v2259 = vld [vmem:[#allocation10 + $0x70] sm:$0xff]
    %v2260 = vld [vmem:[#allocation10 + $0x78] sm:$0xff]
    %v2261 = vld [vmem:[%s7] sm:$0x3]
    %v2263 = vlaneseq
    %v2264 = vshrl.u32 %v2263, 7
    %v2265 = vsub.s32 0, %v2264
    %v2266 = vrot.slane %v2261, %v2265
    %v2267 = vlaneseq
    %v2268 = vshrl.u32 %v2267, 7
    %v2269 = vsub.s32 1, %v2268
    %v2270 = vrot.slane %v2261, %v2269
    %v2289 = vunpack.c.l.b16 %v2245
    %v2290 = vunpack.c.h.b16 %v2245
    %v2291 = vunpack.c.l.b16 %v2246
    %v2292 = vunpack.c.h.b16 %v2246
    %v2293 = vunpack.c.l.b16 %v2247
    %v2294 = vunpack.c.h.b16 %v2247
    %v2295 = vunpack.c.l.b16 %v2248
    %v2296 = vunpack.c.h.b16 %v2248
    %v2297 = vunpack.c.l.b16 %v2249
    %v2298 = vunpack.c.h.b16 %v2249
    %v2299 = vunpack.c.l.b16 %v2250
    %v2300 = vunpack.c.h.b16 %v2250
    %v2301 = vunpack.c.l.b16 %v2251
    %v2302 = vunpack.c.h.b16 %v2251
    %v2303 = vunpack.c.l.b16 %v2252
    %v2304 = vunpack.c.h.b16 %v2252
    %v2305 = vunpack.c.l.b16 %v2253
    %v2306 = vunpack.c.h.b16 %v2253
    %v2307 = vunpack.c.l.b16 %v2254
    %v2308 = vunpack.c.h.b16 %v2254
    %v2309 = vunpack.c.l.b16 %v2255
    %v2310 = vunpack.c.h.b16 %v2255
    %v2311 = vunpack.c.l.b16 %v2256
    %v2312 = vunpack.c.h.b16 %v2256
    %v2313 = vunpack.c.l.b16 %v2257
    %v2314 = vunpack.c.h.b16 %v2257
    %v2315 = vunpack.c.l.b16 %v2258
    %v2316 = vunpack.c.h.b16 %v2258
    %v2317 = vunpack.c.l.b16 %v2259
    %v2318 = vunpack.c.h.b16 %v2259
    %v2319 = vunpack.c.l.b16 %v2260
    %v2320 = vunpack.c.h.b16 %v2260
    %v2321 = vpack.c.b16 %v2291, %v2289
    %v2322 = vpack.c.b16 %v2292, %v2290
    %v2323 = vpack.c.b16 %v2295, %v2293
    %v2324 = vpack.c.b16 %v2296, %v2294
    %v2325 = vpack.c.b16 %v2299, %v2297
    %v2326 = vpack.c.b16 %v2300, %v2298
    %v2327 = vpack.c.b16 %v2303, %v2301
    %v2328 = vpack.c.b16 %v2304, %v2302
    %v2329 = vpack.c.b16 %v2307, %v2305
    %v2330 = vpack.c.b16 %v2308, %v2306
    %v2331 = vpack.c.b16 %v2311, %v2309
    %v2332 = vpack.c.b16 %v2312, %v2310
    %v2333 = vpack.c.b16 %v2315, %v2313
    %v2334 = vpack.c.b16 %v2316, %v2314
    %v2335 = vpack.c.b16 %v2319, %v2317
    %v2336 = vpack.c.b16 %v2320, %v2318
    %2353 = vmatprep.subr.bf16.mxu0 %v2336
    %2354 = vmatpush1.bf16.msra.mxu0 %v2335
    %2355 = vmatprep.subr.bf16.mxu0 %v2334
    %2356 = vmatpush1.bf16.msra.mxu0 %v2333
    %2357 = vmatprep.subr.bf16.mxu0 %v2332
    %2358 = vmatpush1.bf16.msra.mxu0 %v2331
    %2359 = vmatprep.subr.bf16.mxu0 %v2330
    %2360 = vmatpush1.bf16.msra.mxu0 %v2329
    %2361 = vmatprep.subr.bf16.mxu0 %v2328
    %2362 = vmatpush1.bf16.msra.mxu0 %v2327
    %2363 = vmatprep.subr.bf16.mxu0 %v2326
    %2364 = vmatpush1.bf16.msra.mxu0 %v2325
    %2365 = vmatprep.subr.bf16.mxu0 %v2324
    %2366 = vmatpush1.bf16.msra.mxu0 %v2323
    %2367 = vmatprep.subr.bf16.mxu0 %v2322
    %2368 = vmatpush1.bf16.msra.mxu0 %v2321
    %2369 = vmatprep.subr.bf16.mxu0 0
    %2370 = vmatpush2.bf16.msra.mxu0 0
    %2371 = vmatprep.subr.bf16.mxu0 0
    %2372 = vmatpush2.bf16.msra.mxu0 0
    %2373 = vmatprep.subr.bf16.mxu0 0
    %2374 = vmatpush2.bf16.msra.mxu0 0
    %2375 = vmatprep.subr.bf16.mxu0 0
    %2376 = vmatpush2.bf16.msra.mxu0 0
    %2377 = vmatprep.subr.bf16.mxu0 0
    %2378 = vmatpush2.bf16.msra.mxu0 0
    %2379 = vmatprep.subr.bf16.mxu0 0
    %2380 = vmatpush2.bf16.msra.mxu0 0
    %2381 = vmatprep.subr.bf16.mxu0 0
    %2382 = vmatpush2.bf16.msra.mxu0 0
    %2383 = vmatprep.subr.bf16.mxu0 0
    %2384 = vmatpush2.bf16.msra.mxu0 0
    %2385 = vmatprep.mubr.bf16.mxu0 0
    %2386 = vmatmul.mubr.bf16.gmra.mxu0 %v2244
    %v2387 = vpop.f32.mrf.mxu0
    %v2388 = vadd.f32 %v2266, %v2387
    %v2389 = vpop.f32.mrf.mxu0
    %v2390 = vadd.f32 %v2270, %v2389
    %v2391 = vpop.f32.mrf.mxu0
    %v2392 = vadd.f32 %v2266, %v2391
    %v2393 = vpop.f32.mrf.mxu0
    %v2394 = vadd.f32 %v2270, %v2393
    %2395 = vdwg.mxu0
    %v2396 = vmul.f32 %v2388, 0.5
    %v2397 = vmul.f32 %v2390, 0.5
    %v2398 = vmul.f32 %v2392, 0.5
    %v2399 = vmul.f32 %v2394, 0.5
    %v2400 = vmul.f32 %v2388, 0.70710677
    %v2401 = vmul.f32 %v2390, 0.70710677
    %v2402 = vmul.f32 %v2392, 0.70710677
    %v2403 = vmul.f32 %v2394, 0.70710677
    %v2404 = verf.f32.pop %v2400
    %v2405 = verf.f32.pop %v2401
    %v2406 = verf.f32.pop %v2402
    %v2407 = verf.f32.pop %v2403
    %v2408 = vadd.f32 %v2404, 1.0
    %v2409 = vadd.f32 %v2405, 1.0
    %v2410 = vadd.f32 %v2406, 1.0
    %v2411 = vadd.f32 %v2407, 1.0
    %v2412 = vmul.f32 %v2396, %v2408
    %v2413 = vmul.f32 %v2397, %v2409
    %v2414 = vmul.f32 %v2398, %v2410
    %v2415 = vmul.f32 %v2399, %v2411
    %v2416 = vpack.c.bf16 %v2414, %v2412
    %v2417 = vpack.c.bf16 %v2415, %v2413
    %v2418 = vld [vmem:[#allocation11] sm:$0xf]
    %v2419 = vld [vmem:[#allocation11 + $0x4] sm:$0xf]
    %v2420 = vld [vmem:[#allocation11 + $0x8] sm:$0xf]
    %v2421 = vld [vmem:[#allocation11 + $0xc] sm:$0xf]
    %v2422 = vld [vmem:[#allocation11 + $0x10] sm:$0xf]
    %v2423 = vld [vmem:[#allocation11 + $0x14] sm:$0xf]
    %v2424 = vld [vmem:[#allocation11 + $0x18] sm:$0xf]
    %v2425 = vld [vmem:[#allocation11 + $0x1c] sm:$0xf]
    %v2426 = vld [vmem:[#allocation11 + $0x20] sm:$0xf]
    %v2427 = vld [vmem:[#allocation11 + $0x24] sm:$0xf]
    %v2428 = vld [vmem:[#allocation11 + $0x28] sm:$0xf]
    %v2429 = vld [vmem:[#allocation11 + $0x2c] sm:$0xf]
    %v2430 = vld [vmem:[#allocation11 + $0x30] sm:$0xf]
    %v2431 = vld [vmem:[#allocation11 + $0x34] sm:$0xf]
    %v2432 = vld [vmem:[#allocation11 + $0x38] sm:$0xf]
    %v2433 = vld [vmem:[#allocation11 + $0x3c] sm:$0xf]
    %v2434 = vld [vmem:[#allocation11 + $0x40] sm:$0xf]
    %v2435 = vld [vmem:[#allocation11 + $0x44] sm:$0xf]
    %v2436 = vld [vmem:[#allocation11 + $0x48] sm:$0xf]
    %v2437 = vld [vmem:[#allocation11 + $0x4c] sm:$0xf]
    %v2438 = vld [vmem:[#allocation11 + $0x50] sm:$0xf]
    %v2439 = vld [vmem:[#allocation11 + $0x54] sm:$0xf]
    %v2440 = vld [vmem:[#allocation11 + $0x58] sm:$0xf]
    %v2441 = vld [vmem:[#allocation11 + $0x5c] sm:$0xf]
    %v2442 = vld [vmem:[#allocation11 + $0x60] sm:$0xf]
    %v2443 = vld [vmem:[#allocation11 + $0x64] sm:$0xf]
    %v2444 = vld [vmem:[#allocation11 + $0x68] sm:$0xf]
    %v2445 = vld [vmem:[#allocation11 + $0x6c] sm:$0xf]
    %v2446 = vld [vmem:[#allocation11 + $0x70] sm:$0xf]
    %v2447 = vld [vmem:[#allocation11 + $0x74] sm:$0xf]
    %v2448 = vld [vmem:[#allocation11 + $0x78] sm:$0xf]
    %v2449 = vld [vmem:[#allocation11 + $0x7c] sm:$0xf]
    %v2450 = vld [vmem:[%s9] sm:$0x1]
    %v2452 = vlaneseq
    %v2453 = vshrl.u32 %v2452, 7
    %v2454 = vsub.s32 0, %v2453
    %v2455 = vrot.slane %v2450, %v2454
    %v2489 = vunpack.c.l.b16 %v2418
    %v2490 = vunpack.c.l.b16 %v2419
    %v2491 = vunpack.c.l.b16 %v2420
    %v2492 = vunpack.c.l.b16 %v2421
    %v2493 = vunpack.c.l.b16 %v2422
    %v2494 = vunpack.c.l.b16 %v2423
    %v2495 = vunpack.c.l.b16 %v2424
    %v2496 = vunpack.c.l.b16 %v2425
    %v2497 = vunpack.c.l.b16 %v2426
    %v2498 = vunpack.c.l.b16 %v2427
    %v2499 = vunpack.c.l.b16 %v2428
    %v2500 = vunpack.c.l.b16 %v2429
    %v2501 = vunpack.c.l.b16 %v2430
    %v2502 = vunpack.c.l.b16 %v2431
    %v2503 = vunpack.c.l.b16 %v2432
    %v2504 = vunpack.c.l.b16 %v2433
    %v2505 = vunpack.c.l.b16 %v2434
    %v2506 = vunpack.c.l.b16 %v2435
    %v2507 = vunpack.c.l.b16 %v2436
    %v2508 = vunpack.c.l.b16 %v2437
    %v2509 = vunpack.c.l.b16 %v2438
    %v2510 = vunpack.c.l.b16 %v2439
    %v2511 = vunpack.c.l.b16 %v2440
    %v2512 = vunpack.c.l.b16 %v2441
    %v2513 = vunpack.c.l.b16 %v2442
    %v2514 = vunpack.c.l.b16 %v2443
    %v2515 = vunpack.c.l.b16 %v2444
    %v2516 = vunpack.c.l.b16 %v2445
    %v2517 = vunpack.c.l.b16 %v2446
    %v2518 = vunpack.c.l.b16 %v2447
    %v2519 = vunpack.c.l.b16 %v2448
    %v2520 = vunpack.c.l.b16 %v2449
    %v2521 = vpack.c.b16 %v2490, %v2489
    %v2522 = vpack.c.b16 %v2492, %v2491
    %v2523 = vpack.c.b16 %v2494, %v2493
    %v2524 = vpack.c.b16 %v2496, %v2495
    %v2525 = vpack.c.b16 %v2498, %v2497
    %v2526 = vpack.c.b16 %v2500, %v2499
    %v2527 = vpack.c.b16 %v2502, %v2501
    %v2528 = vpack.c.b16 %v2504, %v2503
    %v2529 = vpack.c.b16 %v2506, %v2505
    %v2530 = vpack.c.b16 %v2508, %v2507
    %v2531 = vpack.c.b16 %v2510, %v2509
    %v2532 = vpack.c.b16 %v2512, %v2511
    %v2533 = vpack.c.b16 %v2514, %v2513
    %v2534 = vpack.c.b16 %v2516, %v2515
    %v2535 = vpack.c.b16 %v2518, %v2517
    %v2536 = vpack.c.b16 %v2520, %v2519
    %2553 = vmatprep.subr.bf16.mxu0 0
    %2554 = vmatpush1.bf16.msra.mxu0 %v2528
    %2555 = vmatprep.subr.bf16.mxu0 0
    %2556 = vmatpush1.bf16.msra.mxu0 %v2527
    %2557 = vmatprep.subr.bf16.mxu0 0
    %2558 = vmatpush1.bf16.msra.mxu0 %v2526
    %2559 = vmatprep.subr.bf16.mxu0 0
    %2560 = vmatpush1.bf16.msra.mxu0 %v2525
    %2561 = vmatprep.subr.bf16.mxu0 0
    %2562 = vmatpush1.bf16.msra.mxu0 %v2524
    %2563 = vmatprep.subr.bf16.mxu0 0
    %2564 = vmatpush1.bf16.msra.mxu0 %v2523
    %2565 = vmatprep.subr.bf16.mxu0 0
    %2566 = vmatpush1.bf16.msra.mxu0 %v2522
    %2567 = vmatprep.subr.bf16.mxu0 0
    %2568 = vmatpush1.bf16.msra.mxu0 %v2521
    %2569 = vmatprep.subr.bf16.mxu0 0
    %2570 = vmatpush2.bf16.msra.mxu0 %v2536
    %2571 = vmatprep.subr.bf16.mxu0 0
    %2572 = vmatpush2.bf16.msra.mxu0 %v2535
    %2573 = vmatprep.subr.bf16.mxu0 0
    %2574 = vmatpush2.bf16.msra.mxu0 %v2534
    %2575 = vmatprep.subr.bf16.mxu0 0
    %2576 = vmatpush2.bf16.msra.mxu0 %v2533
    %2577 = vmatprep.subr.bf16.mxu0 0
    %2578 = vmatpush2.bf16.msra.mxu0 %v2532
    %2579 = vmatprep.subr.bf16.mxu0 0
    %2580 = vmatpush2.bf16.msra.mxu0 %v2531
    %2581 = vmatprep.subr.bf16.mxu0 0
    %2582 = vmatpush2.bf16.msra.mxu0 %v2530
    %2583 = vmatprep.subr.bf16.mxu0 0
    %2584 = vmatpush2.bf16.msra.mxu0 %v2529
    %2585 = vmatprep.mubr.bf16.mxu0 %v2417
    %2586 = vmatmul.mubr.bf16.gmra.mxu0 %v2416
    %v2587 = vpop.f32.mrf.mxu0
    %v2588 = vadd.f32 %v2455, %v2587
    %v2589 = vpop.f32.mrf.mxu0
    %v2590 = vpop.f32.mrf.mxu0
    %v2591 = vadd.f32 %v2455, %v2590
    %v2592 = vpop.f32.mrf.mxu0
    %2593 = vdwg.mxu0
    %v2594 = vadd.f32 %v2588, %v2242
    %v2595 = vadd.f32 %v2591, %v2243
    %2596 = vst [vmem:[#allocation13] sm:$0xff] %v2594
    %2597 = vst [vmem:[#allocation13 + $0x8] sm:$0xff] %v2595
    // Predicated region
    $region66: #{tpu_custom_call.1} parent=1 // pred_check
      _
    $region67: #{tpu_custom_call.1} parent=1 // pred_check_branch
      %2599 = sbr.rel (0) target = $region69
    $region68: #{tpu_custom_call.1} parent=1 // pred_region
      %s2601 = ssub.s32 256, 256
      %2602 = vsyncadd [#allocation4], %s2601
      %s2603 = sshll.u32 [#allocation13], 4
      %s2604 = int_to_ptr.vmem [resolvable:$true] %s2603
      %2609 = dma.vmem_to_hbm [thread:$0]  %s2604, 256, %s10, [#allocation4], 128, 128, 8
    $region69: #{tpu_custom_call.1} parent=1 // pred_fallthru
      _
    // Predicated region
    $region70: #{tpu_custom_call.1} parent=1 // pred_check
      _
    $region71: #{tpu_custom_call.1} parent=1 // pred_check_branch
      %2611 = sbr.rel (0) target = $region73
    $region72: #{tpu_custom_call.1} parent=1 // pred_region
      %2612 = dma.done [#allocation4], 256
    $region73: #{tpu_custom_call.1} parent=1 // pred_fallthru
      _
    %2613 = vsyncpa [#allocation3], 1
    %2614 = vsyncpa [#allocation6], 1
    %2615 = vsyncpa [#allocation9], 1
    %2616 = vsyncpa [#allocation12], 1
    %2617 = vsyncpa [#allocation4], 1

</llo_original>
